<compile_context>
chip_gen: v7x
topology: tpu7x:2x2x1
jax: 0.10.0
libtpu: 0.0.40
codegen_flags: <defaults>
</compile_context>

<pallas_src>
import jax
import jax.numpy as jnp
from jax.experimental import pallas as pl
from jax.experimental.pallas import tpu as pltpu

P = 3  # spatial zero-pad = max dilation


def _gelu(x):
    # tanh-approximate GELU (VPU + EUP only; no erf dependency).
    return jax.nn.gelu(x, approximate=True)


def _round_up(v, m):
    return -(-v // m) * m


def _pick_nb(n, max_images_per_step=16):
    """Largest divisor of n (<= max) that still leaves >= 2 grid steps when possible."""
    divs = [d for d in range(1, n + 1) if n % d == 0 and d <= max_images_per_step]
    multi = [d for d in divs if n // d >= 2]
    return max(multi) if multi else max(divs)


def _make_kernel(Wp, G, Cin, Cout):
    dilations = (1, 2, 3)

    def kernel(x_ref, mask_ref, w123_ref, b123_ref, w4_ref, b4_ref, o_ref,
               col_ref, pad4_ref, col4_ref):
        L = o_ref.shape[-1]          # Nb * S  (multiple of 128)
        Lx = x_ref.shape[-1]         # L + 2*G

        # --- im2col for fused conv1/2/3: 27 shifted lane-slices stacked on sublanes.
        for c, dil in enumerate(dilations):
            for i in range(3):
                for j in range(3):
                    t = (i - 1) * dil * Wp + (j - 1) * dil
                    r = (c * 9 + i * 3 + j) * Cin
                    col_ref[r:r + Cin, :] = x_ref[:, G + t:G + t + L]

        # One fat MXU matmul (block-diagonal LHS) covers all three dilated convs.
        pre = jnp.dot(w123_ref[...], col_ref[...],
                      preferred_element_type=jnp.float32) + b123_ref[...]
        act = _gelu(pre)                                               # (3*Cout, L)
        added = act[0:Cout, :] + act[Cout:2 * Cout, :] + act[2 * Cout:3 * Cout, :]
        added = added * mask_ref[...]   # zero pad-ring/margins => conv4 'same' zero pad

        # --- conv4: stage `added` into a margin-padded scratch; zero ONLY the margins.
        pad4_ref[:, 0:G] = jnp.zeros((Cout, G), jnp.float32)
        pad4_ref[:, G + L:Lx] = jnp.zeros((Cout, Lx - G - L), jnp.float32)
        pad4_ref[:, G:G + L] = added

        for i in range(3):
            for j in range(3):
                t = (i - 1) * Wp + (j - 1)
                r = (i * 3 + j) * Cout
                col4_ref[r:r + Cout, :] = pad4_ref[:, G + t:G + t + L]

        out = jnp.dot(w4_ref[...], col4_ref[...],
                      preferred_element_type=jnp.float32) + b4_ref[...]
        o_ref[...] = _gelu(out).astype(o_ref.dtype)

    return kernel


def wide_focus(x, w1, b1, w2, b2, w3, b3, w4, b4):
    """x: (N, Cin, H, W) f32. wK: (Cout, Cin, 3, 3) PyTorch OIHW layout. bK: (Cout,)."""
    N, Cin, H, W = x.shape
    Cout = w1.shape[0]

    Hp, Wp = H + 2 * P, W + 2 * P
    Q = Hp * Wp                       # flattened padded-grid length per image
    M = P * (Wp + 1)                  # max |flat tap offset| for dilations 1..3
    S = _round_up(Q + 2 * M, 128)     # per-image lane segment (lane-dense)
    G = _round_up(M, 128)             # global lane margin of the kernel input

    Nb = _pick_nb(N)                  # images per grid step
    Nsteps = N // Nb
    L = Nb * S                        # computation lanes per grid step
    Lx = L + 2 * G

    f32 = jnp.float32

    # --- segmented, margin-padded, lane-dense input layout (one HBM materialization) ---
    xp = jnp.pad(x.astype(f32), ((0, 0), (0, 0), (P, P), (P, P)))            # (N,Cin,Hp,Wp)
    seg = jnp.pad(xp.reshape(N, Cin, Q), ((0, 0), (0, 0), (M, S - M - Q)))   # (N,Cin,S)
    seg = seg.reshape(Nsteps, Nb, Cin, S).transpose(0, 2, 1, 3).reshape(Nsteps, Cin, L)
    x_in = jnp.pad(seg, ((0, 0), (0, 0), (G, G)))                            # (Nsteps,Cin,Lx)

    # 0/1 mask of valid HxW positions inside one lane segment, tiled over Nb images.
    rr = jnp.arange(Hp)
    cc = jnp.arange(Wp)
    valid = (((rr >= P) & (rr < P + H))[:, None]
             & ((cc >= P) & (cc < P + W))[None, :]).astype(f32).reshape(Q)
    seg_mask = jnp.zeros((S,), f32).at[M:M + Q].set(valid)
    mask = jnp.tile(seg_mask, Nb).reshape(1, L)

    # --- weights: block-diagonal (3*Cout, 27*Cin) for conv1-3; (Cout, 9*Cout) for conv4 ---
    def tapmat(w):   # (Cout, Cin, 3, 3) -> (Cout, 9*Cin), tap-major / channel-minor
        return jnp.transpose(w, (0, 2, 3, 1)).reshape(w.shape[0], -1).astype(f32)

    w123 = jnp.zeros((3 * Cout, 27 * Cin), f32)
    for c, w in enumerate((w1, w2, w3)):
        w123 = w123.at[c * Cout:(c + 1) * Cout,
                       c * 9 * Cin:(c + 1) * 9 * Cin].set(tapmat(w))
    b123 = jnp.concatenate([b1, b2, b3]).reshape(3 * Cout, 1).astype(f32)
    w4p = tapmat(w4)                                   # (Cout, 9*Cout)  (Cin == Cout here)
    b4p = b4.reshape(Cout, 1).astype(f32)

    kernel = _make_kernel(Wp, G, Cin, Cout)

    flops = 2 * Nsteps * L * (3 * Cout * 27 * Cin + Cout * 9 * Cout)
    transc = Nsteps * L * 4 * Cout
    bytes_accessed = 4 * (Nsteps * (Cin * Lx + Cout * L) + L
                          + 3 * Cout * 27 * Cin + Cout * 9 * Cout + 4 * Cout)

    out_flat = pl.pallas_call(
        kernel,
        out_shape=jax.ShapeDtypeStruct((Nsteps, Cout, L), x.dtype),
        grid_spec=pltpu.PrefetchScalarGridSpec(
            num_scalar_prefetch=0,
            grid=(Nsteps,),
            in_specs=[
                pl.BlockSpec((None, Cin, Lx), lambda n: (n, 0, 0)),       # x (batch block)
                pl.BlockSpec((1, L), lambda n: (0, 0)),                   # valid mask
                pl.BlockSpec((3 * Cout, 27 * Cin), lambda n: (0, 0)),     # fused conv1-3 W
                pl.BlockSpec((3 * Cout, 1), lambda n: (0, 0)),            # fused conv1-3 b
                pl.BlockSpec((Cout, 9 * Cout), lambda n: (0, 0)),         # conv4 W
                pl.BlockSpec((Cout, 1), lambda n: (0, 0)),                # conv4 b
            ],
            out_specs=pl.BlockSpec((None, Cout, L), lambda n: (n, 0, 0)),
            scratch_shapes=[
                pltpu.VMEM((27 * Cin, L), jnp.float32),                   # im2col conv1-3
                pltpu.VMEM((Cout, Lx), jnp.float32),                      # conv4 staging
                pltpu.VMEM((9 * Cout, L), jnp.float32),                   # im2col conv4
            ],
        ),
        compiler_params=pltpu.CompilerParams(
            dimension_semantics=("parallel",)),
        cost_estimate=pl.CostEstimate(
            flops=int(flops),
            transcendentals=int(transc),
            bytes_accessed=int(bytes_accessed)),
    )(x_in, mask, w123, b123, w4p, b4p)

    # --- un-segment: (Nsteps, Cout, Nb*S) -> (N, Cout, H, W) -----------------------------
    out = out_flat.reshape(Nsteps, Cout, Nb, S)[..., M:M + Q]
    out = out.reshape(Nsteps, Cout, Nb, Hp, Wp)[..., P:P + H, P:P + W]
    out = out.transpose(0, 2, 1, 3, 4).reshape(N, Cout, H, W)
    return out


def wide_focus_ref(x, w1, b1, w2, b2, w3, b3, w4, b4):
    """Pure-JAX/XLA reference matching the PyTorch forward (dropout = identity)."""
    def conv(inp, w, b, dil):
        out = jax.lax.conv_general_dilated(
            inp, w, window_strides=(1, 1),
            padding=((dil, dil), (dil, dil)),
            rhs_dilation=(dil, dil),
            dimension_numbers=("NCHW", "OIHW", "NCHW"),
            precision=jax.lax.Precision.HIGHEST)
        return out + b[None, :, None, None]

    x1 = _gelu(conv(x, w1, b1, 1))
    x2 = _gelu(conv(x, w2, b2, 2))
    x3 = _gelu(conv(x, w3, b3, 3))
    return _gelu(conv(x1 + x2 + x3, w4, b4, 1))


if __name__ == "__main__":
    # Small shapes consistent with the module: in_channels = out_channels = 4.
    N, C, H, W = 2, 4, 16, 16

    key = jax.random.PRNGKey(0)
    kx, k1, kb1, k2, kb2, k3, kb3, k4, kb4 = jax.random.split(key, 9)

    x = jax.random.normal(kx, (N, C, H, W), dtype=jnp.float32)
    w1 = jax.random.normal(k1, (C, C, 3, 3), dtype=jnp.float32) * 0.1
    b1 = jax.random.normal(kb1, (C,), dtype=jnp.float32) * 0.1
    w2 = jax.random.normal(k2, (C, C, 3, 3), dtype=jnp.float32) * 0.1
    b2 = jax.random.normal(kb2, (C,), dtype=jnp.float32) * 0.1
    w3 = jax.random.normal(k3, (C, C, 3, 3), dtype=jnp.float32) * 0.1
    b3 = jax.random.normal(kb3, (C,), dtype=jnp.float32) * 0.1
    w4 = jax.random.normal(k4, (C, C, 3, 3), dtype=jnp.float32) * 0.1
    b4 = jax.random.normal(kb4, (C,), dtype=jnp.float32) * 0.1

    out = jax.block_until_ready(wide_focus(x, w1, b1, w2, b2, w3, b3, w4, b4))
    ref = jax.block_until_ready(wide_focus_ref(x, w1, b1, w2, b2, w3, b3, w4, b4))

    assert out.shape == (N, C, H, W)
    assert jnp.allclose(out, ref, atol=1e-4, rtol=1e-4), "mismatch vs reference"
    print("KERNEL_OK")
</pallas_src>

<mosaic_0001>
module attributes {stable_mosaic.version = 11 : i64} {
  func.func @kernel(%arg0: i32, %arg1: memref<1x4x896xf32, #tpu.memory_space<vmem>>, %arg2: memref<1x640xf32, #tpu.memory_space<vmem>>, %arg3: memref<12x108xf32, #tpu.memory_space<vmem>>, %arg4: memref<12x1xf32, #tpu.memory_space<vmem>>, %arg5: memref<4x36xf32, #tpu.memory_space<vmem>>, %arg6: memref<4x1xf32, #tpu.memory_space<vmem>>, %arg7: memref<1x4x640xf32, #tpu.memory_space<vmem>>, %arg8: memref<108x640xf32, #tpu.memory_space<vmem>>, %arg9: memref<4x896xf32, #tpu.memory_space<vmem>>, %arg10: memref<36x640xf32, #tpu.memory_space<vmem>>) attributes {dimension_semantics = [#tpu.dimension_semantics<parallel>], iteration_bounds = array<i64: 2>, scalar_prefetch = 0 : i64, scratch_operands = 3 : i64, tpu.core_type = #tpu.core_type<tc>, window_params = [{transform_indices = @transform_0, window_bounds = array<i64: 1, 4, 896>}, {pipeline_mode = #tpu.pipeline_mode<synchronous>, transform_indices = @transform_1, window_bounds = array<i64: 1, 640>}, {pipeline_mode = #tpu.pipeline_mode<synchronous>, transform_indices = @transform_2, window_bounds = array<i64: 12, 108>}, {pipeline_mode = #tpu.pipeline_mode<synchronous>, transform_indices = @transform_3, window_bounds = array<i64: 12, 1>}, {pipeline_mode = #tpu.pipeline_mode<synchronous>, transform_indices = @transform_4, window_bounds = array<i64: 4, 36>}, {pipeline_mode = #tpu.pipeline_mode<synchronous>, transform_indices = @transform_5, window_bounds = array<i64: 4, 1>}, {transform_indices = @transform_6, window_bounds = array<i64: 1, 4, 640>}]} {
    %c0 = arith.constant 0 : index
    %c0_0 = arith.constant 0 : index
    %c105 = arith.constant 105 : index
    %0 = vector.load %arg1[%c0, %c0_0, %c105] : memref<1x4x896xf32, #tpu.memory_space<vmem>>, vector<1x4x640xf32>
    %1 = vector.shape_cast %0 : vector<1x4x640xf32> to vector<4x640xf32>
    %c0_1 = arith.constant 0 : index
    %c0_2 = arith.constant 0 : index
    %2 = vector.load %arg8[%c0_1, %c0_2] : memref<108x640xf32, #tpu.memory_space<vmem>>, vector<4x640xf32>
    tpu.vector_store %arg8[%c0_1, %c0_2], %1 {strides = array<i32>} : memref<108x640xf32, #tpu.memory_space<vmem>>, vector<4x640xf32>,
    %c0_3 = arith.constant 0 : index
    %c0_4 = arith.constant 0 : index
    %c106 = arith.constant 106 : index
    %3 = vector.load %arg1[%c0_3, %c0_4, %c106] : memref<1x4x896xf32, #tpu.memory_space<vmem>>, vector<1x4x640xf32>
    %4 = vector.shape_cast %3 : vector<1x4x640xf32> to vector<4x640xf32>
    %c4 = arith.constant 4 : index
    %c0_5 = arith.constant 0 : index
    %5 = vector.load %arg8[%c4, %c0_5] : memref<108x640xf32, #tpu.memory_space<vmem>>, vector<4x640xf32>
    tpu.vector_store %arg8[%c4, %c0_5], %4 {strides = array<i32>} : memref<108x640xf32, #tpu.memory_space<vmem>>, vector<4x640xf32>,
    %c0_6 = arith.constant 0 : index
    %c0_7 = arith.constant 0 : index
    %c107 = arith.constant 107 : index
    %6 = vector.load %arg1[%c0_6, %c0_7, %c107] : memref<1x4x896xf32, #tpu.memory_space<vmem>>, vector<1x4x640xf32>
    %7 = vector.shape_cast %6 : vector<1x4x640xf32> to vector<4x640xf32>
    %c8 = arith.constant 8 : index
    %c0_8 = arith.constant 0 : index
    %8 = vector.load %arg8[%c8, %c0_8] : memref<108x640xf32, #tpu.memory_space<vmem>>, vector<4x640xf32>
    tpu.vector_store %arg8[%c8, %c0_8], %7 {strides = array<i32>} : memref<108x640xf32, #tpu.memory_space<vmem>>, vector<4x640xf32>,
    %c0_9 = arith.constant 0 : index
    %c0_10 = arith.constant 0 : index
    %c127 = arith.constant 127 : index
    %9 = vector.load %arg1[%c0_9, %c0_10, %c127] : memref<1x4x896xf32, #tpu.memory_space<vmem>>, vector<1x4x640xf32>
    %10 = vector.shape_cast %9 : vector<1x4x640xf32> to vector<4x640xf32>
    %c12 = arith.constant 12 : index
    %c0_11 = arith.constant 0 : index
    %11 = vector.load %arg8[%c12, %c0_11] : memref<108x640xf32, #tpu.memory_space<vmem>>, vector<4x640xf32>
    tpu.vector_store %arg8[%c12, %c0_11], %10 {strides = array<i32>} : memref<108x640xf32, #tpu.memory_space<vmem>>, vector<4x640xf32>,
    %c0_12 = arith.constant 0 : index
    %c0_13 = arith.constant 0 : index
    %c128 = arith.constant 128 : index
    %12 = vector.load %arg1[%c0_12, %c0_13, %c128] : memref<1x4x896xf32, #tpu.memory_space<vmem>>, vector<1x4x640xf32>
    %13 = vector.shape_cast %12 : vector<1x4x640xf32> to vector<4x640xf32>
    %c16 = arith.constant 16 : index
    %c0_14 = arith.constant 0 : index
    %14 = vector.load %arg8[%c16, %c0_14] : memref<108x640xf32, #tpu.memory_space<vmem>>, vector<4x640xf32>
    tpu.vector_store %arg8[%c16, %c0_14], %13 {strides = array<i32>} : memref<108x640xf32, #tpu.memory_space<vmem>>, vector<4x640xf32>,
    %c0_15 = arith.constant 0 : index
    %c0_16 = arith.constant 0 : index
    %c129 = arith.constant 129 : index
    %15 = vector.load %arg1[%c0_15, %c0_16, %c129] : memref<1x4x896xf32, #tpu.memory_space<vmem>>, vector<1x4x640xf32>
    %16 = vector.shape_cast %15 : vector<1x4x640xf32> to vector<4x640xf32>
    %c20 = arith.constant 20 : index
    %c0_17 = arith.constant 0 : index
    %17 = vector.load %arg8[%c20, %c0_17] : memref<108x640xf32, #tpu.memory_space<vmem>>, vector<4x640xf32>
    tpu.vector_store %arg8[%c20, %c0_17], %16 {strides = array<i32>} : memref<108x640xf32, #tpu.memory_space<vmem>>, vector<4x640xf32>,
    %c0_18 = arith.constant 0 : index
    %c0_19 = arith.constant 0 : index
    %c149 = arith.constant 149 : index
    %18 = vector.load %arg1[%c0_18, %c0_19, %c149] : memref<1x4x896xf32, #tpu.memory_space<vmem>>, vector<1x4x640xf32>
    %19 = vector.shape_cast %18 : vector<1x4x640xf32> to vector<4x640xf32>
    %c24 = arith.constant 24 : index
    %c0_20 = arith.constant 0 : index
    %20 = vector.load %arg8[%c24, %c0_20] : memref<108x640xf32, #tpu.memory_space<vmem>>, vector<4x640xf32>
    tpu.vector_store %arg8[%c24, %c0_20], %19 {strides = array<i32>} : memref<108x640xf32, #tpu.memory_space<vmem>>, vector<4x640xf32>,
    %c0_21 = arith.constant 0 : index
    %c0_22 = arith.constant 0 : index
    %c150 = arith.constant 150 : index
    %21 = vector.load %arg1[%c0_21, %c0_22, %c150] : memref<1x4x896xf32, #tpu.memory_space<vmem>>, vector<1x4x640xf32>
    %22 = vector.shape_cast %21 : vector<1x4x640xf32> to vector<4x640xf32>
    %c28 = arith.constant 28 : index
    %c0_23 = arith.constant 0 : index
    %23 = vector.load %arg8[%c28, %c0_23] : memref<108x640xf32, #tpu.memory_space<vmem>>, vector<4x640xf32>
    tpu.vector_store %arg8[%c28, %c0_23], %22 {strides = array<i32>} : memref<108x640xf32, #tpu.memory_space<vmem>>, vector<4x640xf32>,
    %c0_24 = arith.constant 0 : index
    %c0_25 = arith.constant 0 : index
    %c151 = arith.constant 151 : index
    %24 = vector.load %arg1[%c0_24, %c0_25, %c151] : memref<1x4x896xf32, #tpu.memory_space<vmem>>, vector<1x4x640xf32>
    %25 = vector.shape_cast %24 : vector<1x4x640xf32> to vector<4x640xf32>
    %c32 = arith.constant 32 : index
    %c0_26 = arith.constant 0 : index
    %26 = vector.load %arg8[%c32, %c0_26] : memref<108x640xf32, #tpu.memory_space<vmem>>, vector<4x640xf32>
    tpu.vector_store %arg8[%c32, %c0_26], %25 {strides = array<i32>} : memref<108x640xf32, #tpu.memory_space<vmem>>, vector<4x640xf32>,
    %c0_27 = arith.constant 0 : index
    %c0_28 = arith.constant 0 : index
    %c82 = arith.constant 82 : index
    %27 = vector.load %arg1[%c0_27, %c0_28, %c82] : memref<1x4x896xf32, #tpu.memory_space<vmem>>, vector<1x4x640xf32>
    %28 = vector.shape_cast %27 : vector<1x4x640xf32> to vector<4x640xf32>
    %c36 = arith.constant 36 : index
    %c0_29 = arith.constant 0 : index
    %29 = vector.load %arg8[%c36, %c0_29] : memref<108x640xf32, #tpu.memory_space<vmem>>, vector<4x640xf32>
    tpu.vector_store %arg8[%c36, %c0_29], %28 {strides = array<i32>} : memref<108x640xf32, #tpu.memory_space<vmem>>, vector<4x640xf32>,
    %c0_30 = arith.constant 0 : index
    %c0_31 = arith.constant 0 : index
    %c84 = arith.constant 84 : index
    %30 = vector.load %arg1[%c0_30, %c0_31, %c84] : memref<1x4x896xf32, #tpu.memory_space<vmem>>, vector<1x4x640xf32>
    %31 = vector.shape_cast %30 : vector<1x4x640xf32> to vector<4x640xf32>
    %c40 = arith.constant 40 : index
    %c0_32 = arith.constant 0 : index
    %32 = vector.load %arg8[%c40, %c0_32] : memref<108x640xf32, #tpu.memory_space<vmem>>, vector<4x640xf32>
    tpu.vector_store %arg8[%c40, %c0_32], %31 {strides = array<i32>} : memref<108x640xf32, #tpu.memory_space<vmem>>, vector<4x640xf32>,
    %c0_33 = arith.constant 0 : index
    %c0_34 = arith.constant 0 : index
    %c86 = arith.constant 86 : index
    %33 = vector.load %arg1[%c0_33, %c0_34, %c86] : memref<1x4x896xf32, #tpu.memory_space<vmem>>, vector<1x4x640xf32>
    %34 = vector.shape_cast %33 : vector<1x4x640xf32> to vector<4x640xf32>
    %c44 = arith.constant 44 : index
    %c0_35 = arith.constant 0 : index
    %35 = vector.load %arg8[%c44, %c0_35] : memref<108x640xf32, #tpu.memory_space<vmem>>, vector<4x640xf32>
    tpu.vector_store %arg8[%c44, %c0_35], %34 {strides = array<i32>} : memref<108x640xf32, #tpu.memory_space<vmem>>, vector<4x640xf32>,
    %c0_36 = arith.constant 0 : index
    %c0_37 = arith.constant 0 : index
    %c126 = arith.constant 126 : index
    %36 = vector.load %arg1[%c0_36, %c0_37, %c126] : memref<1x4x896xf32, #tpu.memory_space<vmem>>, vector<1x4x640xf32>
    %37 = vector.shape_cast %36 : vector<1x4x640xf32> to vector<4x640xf32>
    %c48 = arith.constant 48 : index
    %c0_38 = arith.constant 0 : index
    %38 = vector.load %arg8[%c48, %c0_38] : memref<108x640xf32, #tpu.memory_space<vmem>>, vector<4x640xf32>
    tpu.vector_store %arg8[%c48, %c0_38], %37 {strides = array<i32>} : memref<108x640xf32, #tpu.memory_space<vmem>>, vector<4x640xf32>,
    %c0_39 = arith.constant 0 : index
    %c0_40 = arith.constant 0 : index
    %c128_41 = arith.constant 128 : index
    %39 = vector.load %arg1[%c0_39, %c0_40, %c128_41] : memref<1x4x896xf32, #tpu.memory_space<vmem>>, vector<1x4x640xf32>
    %40 = vector.shape_cast %39 : vector<1x4x640xf32> to vector<4x640xf32>
    %c52 = arith.constant 52 : index
    %c0_42 = arith.constant 0 : index
    %41 = vector.load %arg8[%c52, %c0_42] : memref<108x640xf32, #tpu.memory_space<vmem>>, vector<4x640xf32>
    tpu.vector_store %arg8[%c52, %c0_42], %40 {strides = array<i32>} : memref<108x640xf32, #tpu.memory_space<vmem>>, vector<4x640xf32>,
    %c0_43 = arith.constant 0 : index
    %c0_44 = arith.constant 0 : index
    %c130 = arith.constant 130 : index
    %42 = vector.load %arg1[%c0_43, %c0_44, %c130] : memref<1x4x896xf32, #tpu.memory_space<vmem>>, vector<1x4x640xf32>
    %43 = vector.shape_cast %42 : vector<1x4x640xf32> to vector<4x640xf32>
    %c56 = arith.constant 56 : index
    %c0_45 = arith.constant 0 : index
    %44 = vector.load %arg8[%c56, %c0_45] : memref<108x640xf32, #tpu.memory_space<vmem>>, vector<4x640xf32>
    tpu.vector_store %arg8[%c56, %c0_45], %43 {strides = array<i32>} : memref<108x640xf32, #tpu.memory_space<vmem>>, vector<4x640xf32>,
    %c0_46 = arith.constant 0 : index
    %c0_47 = arith.constant 0 : index
    %c170 = arith.constant 170 : index
    %45 = vector.load %arg1[%c0_46, %c0_47, %c170] : memref<1x4x896xf32, #tpu.memory_space<vmem>>, vector<1x4x640xf32>
    %46 = vector.shape_cast %45 : vector<1x4x640xf32> to vector<4x640xf32>
    %c60 = arith.constant 60 : index
    %c0_48 = arith.constant 0 : index
    %47 = vector.load %arg8[%c60, %c0_48] : memref<108x640xf32, #tpu.memory_space<vmem>>, vector<4x640xf32>
    tpu.vector_store %arg8[%c60, %c0_48], %46 {strides = array<i32>} : memref<108x640xf32, #tpu.memory_space<vmem>>, vector<4x640xf32>,
    %c0_49 = arith.constant 0 : index
    %c0_50 = arith.constant 0 : index
    %c172 = arith.constant 172 : index
    %48 = vector.load %arg1[%c0_49, %c0_50, %c172] : memref<1x4x896xf32, #tpu.memory_space<vmem>>, vector<1x4x640xf32>
    %49 = vector.shape_cast %48 : vector<1x4x640xf32> to vector<4x640xf32>
    %c64 = arith.constant 64 : index
    %c0_51 = arith.constant 0 : index
    %50 = vector.load %arg8[%c64, %c0_51] : memref<108x640xf32, #tpu.memory_space<vmem>>, vector<4x640xf32>
    tpu.vector_store %arg8[%c64, %c0_51], %49 {strides = array<i32>} : memref<108x640xf32, #tpu.memory_space<vmem>>, vector<4x640xf32>,
    %c0_52 = arith.constant 0 : index
    %c0_53 = arith.constant 0 : index
    %c174 = arith.constant 174 : index
    %51 = vector.load %arg1[%c0_52, %c0_53, %c174] : memref<1x4x896xf32, #tpu.memory_space<vmem>>, vector<1x4x640xf32>
    %52 = vector.shape_cast %51 : vector<1x4x640xf32> to vector<4x640xf32>
    %c68 = arith.constant 68 : index
    %c0_54 = arith.constant 0 : index
    %53 = vector.load %arg8[%c68, %c0_54] : memref<108x640xf32, #tpu.memory_space<vmem>>, vector<4x640xf32>
    tpu.vector_store %arg8[%c68, %c0_54], %52 {strides = array<i32>} : memref<108x640xf32, #tpu.memory_space<vmem>>, vector<4x640xf32>,
    %c0_55 = arith.constant 0 : index
    %c0_56 = arith.constant 0 : index
    %c59 = arith.constant 59 : index
    %54 = vector.load %arg1[%c0_55, %c0_56, %c59] : memref<1x4x896xf32, #tpu.memory_space<vmem>>, vector<1x4x640xf32>
    %55 = vector.shape_cast %54 : vector<1x4x640xf32> to vector<4x640xf32>
    %c72 = arith.constant 72 : index
    %c0_57 = arith.constant 0 : index
    %56 = vector.load %arg8[%c72, %c0_57] : memref<108x640xf32, #tpu.memory_space<vmem>>, vector<4x640xf32>
    tpu.vector_store %arg8[%c72, %c0_57], %55 {strides = array<i32>} : memref<108x640xf32, #tpu.memory_space<vmem>>, vector<4x640xf32>,
    %c0_58 = arith.constant 0 : index
    %c0_59 = arith.constant 0 : index
    %c62 = arith.constant 62 : index
    %57 = vector.load %arg1[%c0_58, %c0_59, %c62] : memref<1x4x896xf32, #tpu.memory_space<vmem>>, vector<1x4x640xf32>
    %58 = vector.shape_cast %57 : vector<1x4x640xf32> to vector<4x640xf32>
    %c76 = arith.constant 76 : index
    %c0_60 = arith.constant 0 : index
    %59 = vector.load %arg8[%c76, %c0_60] : memref<108x640xf32, #tpu.memory_space<vmem>>, vector<4x640xf32>
    tpu.vector_store %arg8[%c76, %c0_60], %58 {strides = array<i32>} : memref<108x640xf32, #tpu.memory_space<vmem>>, vector<4x640xf32>,
    %c0_61 = arith.constant 0 : index
    %c0_62 = arith.constant 0 : index
    %c65 = arith.constant 65 : index
    %60 = vector.load %arg1[%c0_61, %c0_62, %c65] : memref<1x4x896xf32, #tpu.memory_space<vmem>>, vector<1x4x640xf32>
    %61 = vector.shape_cast %60 : vector<1x4x640xf32> to vector<4x640xf32>
    %c80 = arith.constant 80 : index
    %c0_63 = arith.constant 0 : index
    %62 = vector.load %arg8[%c80, %c0_63] : memref<108x640xf32, #tpu.memory_space<vmem>>, vector<4x640xf32>
    tpu.vector_store %arg8[%c80, %c0_63], %61 {strides = array<i32>} : memref<108x640xf32, #tpu.memory_space<vmem>>, vector<4x640xf32>,
    %c0_64 = arith.constant 0 : index
    %c0_65 = arith.constant 0 : index
    %c125 = arith.constant 125 : index
    %63 = vector.load %arg1[%c0_64, %c0_65, %c125] : memref<1x4x896xf32, #tpu.memory_space<vmem>>, vector<1x4x640xf32>
    %64 = vector.shape_cast %63 : vector<1x4x640xf32> to vector<4x640xf32>
    %c84_66 = arith.constant 84 : index
    %c0_67 = arith.constant 0 : index
    %65 = vector.load %arg8[%c84_66, %c0_67] : memref<108x640xf32, #tpu.memory_space<vmem>>, vector<4x640xf32>
    tpu.vector_store %arg8[%c84_66, %c0_67], %64 {strides = array<i32>} : memref<108x640xf32, #tpu.memory_space<vmem>>, vector<4x640xf32>,
    %c0_68 = arith.constant 0 : index
    %c0_69 = arith.constant 0 : index
    %c128_70 = arith.constant 128 : index
    %66 = vector.load %arg1[%c0_68, %c0_69, %c128_70] : memref<1x4x896xf32, #tpu.memory_space<vmem>>, vector<1x4x640xf32>
    %67 = vector.shape_cast %66 : vector<1x4x640xf32> to vector<4x640xf32>
    %c88 = arith.constant 88 : index
    %c0_71 = arith.constant 0 : index
    %68 = vector.load %arg8[%c88, %c0_71] : memref<108x640xf32, #tpu.memory_space<vmem>>, vector<4x640xf32>
    tpu.vector_store %arg8[%c88, %c0_71], %67 {strides = array<i32>} : memref<108x640xf32, #tpu.memory_space<vmem>>, vector<4x640xf32>,
    %c0_72 = arith.constant 0 : index
    %c0_73 = arith.constant 0 : index
    %c131 = arith.constant 131 : index
    %69 = vector.load %arg1[%c0_72, %c0_73, %c131] : memref<1x4x896xf32, #tpu.memory_space<vmem>>, vector<1x4x640xf32>
    %70 = vector.shape_cast %69 : vector<1x4x640xf32> to vector<4x640xf32>
    %c92 = arith.constant 92 : index
    %c0_74 = arith.constant 0 : index
    %71 = vector.load %arg8[%c92, %c0_74] : memref<108x640xf32, #tpu.memory_space<vmem>>, vector<4x640xf32>
    tpu.vector_store %arg8[%c92, %c0_74], %70 {strides = array<i32>} : memref<108x640xf32, #tpu.memory_space<vmem>>, vector<4x640xf32>,
    %c0_75 = arith.constant 0 : index
    %c0_76 = arith.constant 0 : index
    %c191 = arith.constant 191 : index
    %72 = vector.load %arg1[%c0_75, %c0_76, %c191] : memref<1x4x896xf32, #tpu.memory_space<vmem>>, vector<1x4x640xf32>
    %73 = vector.shape_cast %72 : vector<1x4x640xf32> to vector<4x640xf32>
    %c96 = arith.constant 96 : index
    %c0_77 = arith.constant 0 : index
    %74 = vector.load %arg8[%c96, %c0_77] : memref<108x640xf32, #tpu.memory_space<vmem>>, vector<4x640xf32>
    tpu.vector_store %arg8[%c96, %c0_77], %73 {strides = array<i32>} : memref<108x640xf32, #tpu.memory_space<vmem>>, vector<4x640xf32>,
    %c0_78 = arith.constant 0 : index
    %c0_79 = arith.constant 0 : index
    %c194 = arith.constant 194 : index
    %75 = vector.load %arg1[%c0_78, %c0_79, %c194] : memref<1x4x896xf32, #tpu.memory_space<vmem>>, vector<1x4x640xf32>
    %76 = vector.shape_cast %75 : vector<1x4x640xf32> to vector<4x640xf32>
    %c100 = arith.constant 100 : index
    %c0_80 = arith.constant 0 : index
    %77 = vector.load %arg8[%c100, %c0_80] : memref<108x640xf32, #tpu.memory_space<vmem>>, vector<4x640xf32>
    tpu.vector_store %arg8[%c100, %c0_80], %76 {strides = array<i32>} : memref<108x640xf32, #tpu.memory_space<vmem>>, vector<4x640xf32>,
    %c0_81 = arith.constant 0 : index
    %c0_82 = arith.constant 0 : index
    %c197 = arith.constant 197 : index
    %78 = vector.load %arg1[%c0_81, %c0_82, %c197] : memref<1x4x896xf32, #tpu.memory_space<vmem>>, vector<1x4x640xf32>
    %79 = vector.shape_cast %78 : vector<1x4x640xf32> to vector<4x640xf32>
    %c104 = arith.constant 104 : index
    %c0_83 = arith.constant 0 : index
    %80 = vector.load %arg8[%c104, %c0_83] : memref<108x640xf32, #tpu.memory_space<vmem>>, vector<4x640xf32>
    tpu.vector_store %arg8[%c104, %c0_83], %79 {strides = array<i32>} : memref<108x640xf32, #tpu.memory_space<vmem>>, vector<4x640xf32>,
    %c0_84 = arith.constant 0 : index
    %c0_85 = arith.constant 0 : index
    %81 = vector.load %arg3[%c0_84, %c0_85] : memref<12x108xf32, #tpu.memory_space<vmem>>, vector<12x108xf32>
    %c0_86 = arith.constant 0 : index
    %c0_87 = arith.constant 0 : index
    %82 = vector.load %arg8[%c0_86, %c0_87] : memref<108x640xf32, #tpu.memory_space<vmem>>, vector<108x640xf32>
    %cst = arith.constant dense<0.000000e+00> : vector<12x640xf32>
    %83 = tpu.matmul %81, %82, %cst {dimension_numbers = #tpu.dot_dimension_numbers<[1], [0], [0], [1], [0, 0, 1, 1], [], []>} : vector<12x108xf32>, vector<108x640xf32>, vector<12x640xf32> -> vector<12x640xf32>
    %c0_88 = arith.constant 0 : index
    %c0_89 = arith.constant 0 : index
    %84 = vector.load %arg4[%c0_88, %c0_89] : memref<12x1xf32, #tpu.memory_space<vmem>>, vector<12x1xf32>
    %85 = vector.broadcast %84 : vector<12x1xf32> to vector<12x640xf32>
    %86 = arith.addf %83, %85 : vector<12x640xf32>
    %87 = arith.mulf %86, %86 : vector<12x640xf32>
    %88 = arith.mulf %86, %87 : vector<12x640xf32>
    %cst_90 = arith.constant 4.471500e-02 : f32
    %89 = vector.broadcast %cst_90 : f32 to vector<12x640xf32>
    %90 = arith.mulf %89, %88 : vector<12x640xf32>
    %91 = arith.addf %86, %90 : vector<12x640xf32>
    %cst_91 = arith.constant 0.797884583 : f32
    %92 = vector.broadcast %cst_91 : f32 to vector<12x640xf32>
    %93 = arith.mulf %92, %91 : vector<12x640xf32>
    %94 = math.tanh %93 : vector<12x640xf32>
    %cst_92 = arith.constant 1.000000e+00 : f32
    %95 = vector.broadcast %cst_92 : f32 to vector<12x640xf32>
    %96 = arith.addf %95, %94 : vector<12x640xf32>
    %cst_93 = arith.constant 5.000000e-01 : f32
    %97 = vector.broadcast %cst_93 : f32 to vector<12x640xf32>
    %98 = arith.mulf %97, %96 : vector<12x640xf32>
    %99 = arith.mulf %86, %98 : vector<12x640xf32>
    %100 = vector.extract_strided_slice %99 {offsets = [0, 0], sizes = [4, 640], strides = [1, 1]} : vector<12x640xf32> to vector<4x640xf32>
    %101 = vector.extract_strided_slice %99 {offsets = [4, 0], sizes = [4, 640], strides = [1, 1]} : vector<12x640xf32> to vector<4x640xf32>
    %102 = arith.addf %100, %101 : vector<4x640xf32>
    %103 = vector.extract_strided_slice %99 {offsets = [8, 0], sizes = [4, 640], strides = [1, 1]} : vector<12x640xf32> to vector<4x640xf32>
    %104 = arith.addf %102, %103 : vector<4x640xf32>
    %c0_94 = arith.constant 0 : index
    %c0_95 = arith.constant 0 : index
    %105 = vector.load %arg2[%c0_94, %c0_95] : memref<1x640xf32, #tpu.memory_space<vmem>>, vector<1x640xf32>
    %106 = vector.broadcast %105 : vector<1x640xf32> to vector<4x640xf32>
    %107 = arith.mulf %104, %106 : vector<4x640xf32>
    %cst_96 = arith.constant 0.000000e+00 : f32
    %108 = vector.broadcast %cst_96 : f32 to vector<4x128xf32>
    %c0_97 = arith.constant 0 : index
    %c0_98 = arith.constant 0 : index
    %109 = vector.load %arg9[%c0_97, %c0_98] : memref<4x896xf32, #tpu.memory_space<vmem>>, vector<4x128xf32>
    tpu.vector_store %arg9[%c0_97, %c0_98], %108 {strides = array<i32>} : memref<4x896xf32, #tpu.memory_space<vmem>>, vector<4x128xf32>,
    %cst_99 = arith.constant 0.000000e+00 : f32
    %110 = vector.broadcast %cst_99 : f32 to vector<4x128xf32>
    %c0_100 = arith.constant 0 : index
    %c768 = arith.constant 768 : index
    %111 = vector.load %arg9[%c0_100, %c768] : memref<4x896xf32, #tpu.memory_space<vmem>>, vector<4x128xf32>
    tpu.vector_store %arg9[%c0_100, %c768], %110 {strides = array<i32>} : memref<4x896xf32, #tpu.memory_space<vmem>>, vector<4x128xf32>,
    %c0_101 = arith.constant 0 : index
    %c128_102 = arith.constant 128 : index
    %112 = vector.load %arg9[%c0_101, %c128_102] : memref<4x896xf32, #tpu.memory_space<vmem>>, vector<4x640xf32>
    tpu.vector_store %arg9[%c0_101, %c128_102], %107 {strides = array<i32>} : memref<4x896xf32, #tpu.memory_space<vmem>>, vector<4x640xf32>,
    %c0_103 = arith.constant 0 : index
    %c105_104 = arith.constant 105 : index
    %113 = vector.load %arg9[%c0_103, %c105_104] : memref<4x896xf32, #tpu.memory_space<vmem>>, vector<4x640xf32>
    %c0_105 = arith.constant 0 : index
    %c0_106 = arith.constant 0 : index
    %114 = vector.load %arg10[%c0_105, %c0_106] : memref<36x640xf32, #tpu.memory_space<vmem>>, vector<4x640xf32>
    tpu.vector_store %arg10[%c0_105, %c0_106], %113 {strides = array<i32>} : memref<36x640xf32, #tpu.memory_space<vmem>>, vector<4x640xf32>,
    %c0_107 = arith.constant 0 : index
    %c106_108 = arith.constant 106 : index
    %115 = vector.load %arg9[%c0_107, %c106_108] : memref<4x896xf32, #tpu.memory_space<vmem>>, vector<4x640xf32>
    %c4_109 = arith.constant 4 : index
    %c0_110 = arith.constant 0 : index
    %116 = vector.load %arg10[%c4_109, %c0_110] : memref<36x640xf32, #tpu.memory_space<vmem>>, vector<4x640xf32>
    tpu.vector_store %arg10[%c4_109, %c0_110], %115 {strides = array<i32>} : memref<36x640xf32, #tpu.memory_space<vmem>>, vector<4x640xf32>,
    %c0_111 = arith.constant 0 : index
    %c107_112 = arith.constant 107 : index
    %117 = vector.load %arg9[%c0_111, %c107_112] : memref<4x896xf32, #tpu.memory_space<vmem>>, vector<4x640xf32>
    %c8_113 = arith.constant 8 : index
    %c0_114 = arith.constant 0 : index
    %118 = vector.load %arg10[%c8_113, %c0_114] : memref<36x640xf32, #tpu.memory_space<vmem>>, vector<4x640xf32>
    tpu.vector_store %arg10[%c8_113, %c0_114], %117 {strides = array<i32>} : memref<36x640xf32, #tpu.memory_space<vmem>>, vector<4x640xf32>,
    %c0_115 = arith.constant 0 : index
    %c127_116 = arith.constant 127 : index
    %119 = vector.load %arg9[%c0_115, %c127_116] : memref<4x896xf32, #tpu.memory_space<vmem>>, vector<4x640xf32>
    %c12_117 = arith.constant 12 : index
    %c0_118 = arith.constant 0 : index
    %120 = vector.load %arg10[%c12_117, %c0_118] : memref<36x640xf32, #tpu.memory_space<vmem>>, vector<4x640xf32>
    tpu.vector_store %arg10[%c12_117, %c0_118], %119 {strides = array<i32>} : memref<36x640xf32, #tpu.memory_space<vmem>>, vector<4x640xf32>,
    %c0_119 = arith.constant 0 : index
    %c128_120 = arith.constant 128 : index
    %121 = vector.load %arg9[%c0_119, %c128_120] : memref<4x896xf32, #tpu.memory_space<vmem>>, vector<4x640xf32>
    %c16_121 = arith.constant 16 : index
    %c0_122 = arith.constant 0 : index
    %122 = vector.load %arg10[%c16_121, %c0_122] : memref<36x640xf32, #tpu.memory_space<vmem>>, vector<4x640xf32>
    tpu.vector_store %arg10[%c16_121, %c0_122], %121 {strides = array<i32>} : memref<36x640xf32, #tpu.memory_space<vmem>>, vector<4x640xf32>,
    %c0_123 = arith.constant 0 : index
    %c129_124 = arith.constant 129 : index
    %123 = vector.load %arg9[%c0_123, %c129_124] : memref<4x896xf32, #tpu.memory_space<vmem>>, vector<4x640xf32>
    %c20_125 = arith.constant 20 : index
    %c0_126 = arith.constant 0 : index
    %124 = vector.load %arg10[%c20_125, %c0_126] : memref<36x640xf32, #tpu.memory_space<vmem>>, vector<4x640xf32>
    tpu.vector_store %arg10[%c20_125, %c0_126], %123 {strides = array<i32>} : memref<36x640xf32, #tpu.memory_space<vmem>>, vector<4x640xf32>,
    %c0_127 = arith.constant 0 : index
    %c149_128 = arith.constant 149 : index
    %125 = vector.load %arg9[%c0_127, %c149_128] : memref<4x896xf32, #tpu.memory_space<vmem>>, vector<4x640xf32>
    %c24_129 = arith.constant 24 : index
    %c0_130 = arith.constant 0 : index
    %126 = vector.load %arg10[%c24_129, %c0_130] : memref<36x640xf32, #tpu.memory_space<vmem>>, vector<4x640xf32>
    tpu.vector_store %arg10[%c24_129, %c0_130], %125 {strides = array<i32>} : memref<36x640xf32, #tpu.memory_space<vmem>>, vector<4x640xf32>,
    %c0_131 = arith.constant 0 : index
    %c150_132 = arith.constant 150 : index
    %127 = vector.load %arg9[%c0_131, %c150_132] : memref<4x896xf32, #tpu.memory_space<vmem>>, vector<4x640xf32>
    %c28_133 = arith.constant 28 : index
    %c0_134 = arith.constant 0 : index
    %128 = vector.load %arg10[%c28_133, %c0_134] : memref<36x640xf32, #tpu.memory_space<vmem>>, vector<4x640xf32>
    tpu.vector_store %arg10[%c28_133, %c0_134], %127 {strides = array<i32>} : memref<36x640xf32, #tpu.memory_space<vmem>>, vector<4x640xf32>,
    %c0_135 = arith.constant 0 : index
    %c151_136 = arith.constant 151 : index
    %129 = vector.load %arg9[%c0_135, %c151_136] : memref<4x896xf32, #tpu.memory_space<vmem>>, vector<4x640xf32>
    %c32_137 = arith.constant 32 : index
    %c0_138 = arith.constant 0 : index
    %130 = vector.load %arg10[%c32_137, %c0_138] : memref<36x640xf32, #tpu.memory_space<vmem>>, vector<4x640xf32>
    tpu.vector_store %arg10[%c32_137, %c0_138], %129 {strides = array<i32>} : memref<36x640xf32, #tpu.memory_space<vmem>>, vector<4x640xf32>,
    %c0_139 = arith.constant 0 : index
    %c0_140 = arith.constant 0 : index
    %131 = vector.load %arg5[%c0_139, %c0_140] : memref<4x36xf32, #tpu.memory_space<vmem>>, vector<4x36xf32>
    %c0_141 = arith.constant 0 : index
    %c0_142 = arith.constant 0 : index
    %132 = vector.load %arg10[%c0_141, %c0_142] : memref<36x640xf32, #tpu.memory_space<vmem>>, vector<36x640xf32>
    %cst_143 = arith.constant dense<0.000000e+00> : vector<4x640xf32>
    %133 = tpu.matmul %131, %132, %cst_143 {dimension_numbers = #tpu.dot_dimension_numbers<[1], [0], [0], [1], [0, 0, 1, 1], [], []>} : vector<4x36xf32>, vector<36x640xf32>, vector<4x640xf32> -> vector<4x640xf32>
    %c0_144 = arith.constant 0 : index
    %c0_145 = arith.constant 0 : index
    %134 = vector.load %arg6[%c0_144, %c0_145] : memref<4x1xf32, #tpu.memory_space<vmem>>, vector<4x1xf32>
    %135 = vector.broadcast %134 : vector<4x1xf32> to vector<4x640xf32>
    %136 = arith.addf %133, %135 : vector<4x640xf32>
    %137 = arith.mulf %136, %136 : vector<4x640xf32>
    %138 = arith.mulf %136, %137 : vector<4x640xf32>
    %cst_146 = arith.constant 4.471500e-02 : f32
    %139 = vector.broadcast %cst_146 : f32 to vector<4x640xf32>
    %140 = arith.mulf %139, %138 : vector<4x640xf32>
    %141 = arith.addf %136, %140 : vector<4x640xf32>
    %cst_147 = arith.constant 0.797884583 : f32
    %142 = vector.broadcast %cst_147 : f32 to vector<4x640xf32>
    %143 = arith.mulf %142, %141 : vector<4x640xf32>
    %144 = math.tanh %143 : vector<4x640xf32>
    %cst_148 = arith.constant 1.000000e+00 : f32
    %145 = vector.broadcast %cst_148 : f32 to vector<4x640xf32>
    %146 = arith.addf %145, %144 : vector<4x640xf32>
    %cst_149 = arith.constant 5.000000e-01 : f32
    %147 = vector.broadcast %cst_149 : f32 to vector<4x640xf32>
    %148 = arith.mulf %147, %146 : vector<4x640xf32>
    %149 = arith.mulf %136, %148 : vector<4x640xf32>
    %c0_150 = arith.constant 0 : index
    %c0_151 = arith.constant 0 : index
    %c0_152 = arith.constant 0 : index
    %150 = vector.load %arg7[%c0_150, %c0_151, %c0_152] : memref<1x4x640xf32, #tpu.memory_space<vmem>>, vector<1x4x640xf32>
    %151 = vector.shape_cast %150 : vector<1x4x640xf32> to vector<4x640xf32>
    %152 = vector.shape_cast %149 : vector<4x640xf32> to vector<1x4x640xf32>
    tpu.vector_store %arg7[%c0_150, %c0_151, %c0_152], %152 {strides = array<i32>} : memref<1x4x640xf32, #tpu.memory_space<vmem>>, vector<1x4x640xf32>,
    return
  }
  func.func @transform_0(%arg0: i32) -> (i32, i32, i32) {
    %c0_i32 = arith.constant 0 : i32
    %c0_i32_0 = arith.constant 0 : i32
    %c0_i32_1 = arith.constant 0 : i32
    return %arg0, %c0_i32, %c0_i32_0 : i32, i32, i32
  }
  func.func @transform_1(%arg0: i32) -> (i32, i32) {
    %c0_i32 = arith.constant 0 : i32
    %c0_i32_0 = arith.constant 0 : i32
    %c0_i32_1 = arith.constant 0 : i32
    return %c0_i32, %c0_i32_0 : i32, i32
  }
  func.func @transform_2(%arg0: i32) -> (i32, i32) {
    %c0_i32 = arith.constant 0 : i32
    %c0_i32_0 = arith.constant 0 : i32
    %c0_i32_1 = arith.constant 0 : i32
    return %c0_i32, %c0_i32_0 : i32, i32
  }
  func.func @transform_3(%arg0: i32) -> (i32, i32) {
    %c0_i32 = arith.constant 0 : i32
    %c0_i32_0 = arith.constant 0 : i32
    %c0_i32_1 = arith.constant 0 : i32
    return %c0_i32, %c0_i32_0 : i32, i32
  }
  func.func @transform_4(%arg0: i32) -> (i32, i32) {
    %c0_i32 = arith.constant 0 : i32
    %c0_i32_0 = arith.constant 0 : i32
    %c0_i32_1 = arith.constant 0 : i32
    return %c0_i32, %c0_i32_0 : i32, i32
  }
  func.func @transform_5(%arg0: i32) -> (i32, i32) {
    %c0_i32 = arith.constant 0 : i32
    %c0_i32_0 = arith.constant 0 : i32
    %c0_i32_1 = arith.constant 0 : i32
    return %c0_i32, %c0_i32_0 : i32, i32
  }
  func.func @transform_6(%arg0: i32) -> (i32, i32, i32) {
    %c0_i32 = arith.constant 0 : i32
    %c0_i32_0 = arith.constant 0 : i32
    %c0_i32_1 = arith.constant 0 : i32
    return %arg0, %c0_i32, %c0_i32_0 : i32, i32, i32
  }
}

</mosaic_0001>

<llo_original>
// kernel: tpu_custom_call.1
$region0: #{tpu_custom_call.1}
  #allocation0 [shape = 'u32[]', space=smem, size = 0x4, offset = 0x4, fixed_abs, tag = 'smem constant byte address 0x4 - core index']
  #allocation1 [shape = 'u32[144,128]{1,0:T(1,128)}', space=vmem, size = 0x12000, scoped, tag = 'internal scratch']
  #allocation2 [shape = 'f32[108,640]{1,0:T(8,128)}', space=vmem, size = 0x46000, scoped, tag = 'scratch operand']
  #allocation3 [shape = 'f32[4,896]{1,0:T(4,128)}', space=vmem, size = 0x3800, scoped, tag = 'scratch operand']
  #allocation4 [shape = 'f32[36,640]{1,0:T(8,128)}', space=vmem, size = 0x19000, scoped, tag = 'scratch operand']
  %s0 = inlined_call_operand.hbm [shape: f32[2,4,896], index: 0, kind: input, shape index: {}]
  %s1 = inlined_call_operand.vmem [shape: f32[1,640], index: 1, kind: input, shape index: {}]
  %s2 = inlined_call_operand.vmem [shape: f32[12,108], index: 2, kind: input, shape index: {}]
  %s3 = inlined_call_operand.vmem [shape: f32[12,1], index: 3, kind: input, shape index: {}]
  %s4 = inlined_call_operand.vmem [shape: f32[4,36], index: 4, kind: input, shape index: {}]
  %s5 = inlined_call_operand.vmem [shape: f32[4,1], index: 5, kind: input, shape index: {}]
  %s6 = inlined_call_operand.hbm [shape: f32[2,4,640], index: 6, kind: output, shape index: {}]
  %s7 = sld [smem:[#allocation0]]
  $region61: #{tpu_custom_call.1} parent=0
    _
  %s9 = ssub.s32 1, %s7
  %s10 = scalar_select 0, %s9, %s7
  $region1: #{tpu_custom_call.1} parent=0
    #allocation5 [shape = 'u8[28672]{0}', space=vmem, size = 0x7000, scoped, tag = 'input window, operand 0']
    #allocation6 [shape = 's32[2]{0}', space=sflag, size = 0x8, scoped, tag = 'scoped memory for tpu_custom_call.1']
    #allocation7 [shape = 's32[2]{0}', space=sflag, size = 0x8, scoped, tag = 'scoped memory for tpu_custom_call.1']
    #allocation8 [shape = 'u8[20480]{0}', space=vmem, size = 0x5000, scoped, tag = 'output window, operand 0']
    %11 = vsyncpa [#allocation6], 0
    %s12 = scalar_lea.sflag [#allocation6], 1
    %13 = vsyncpa %s12, 0
    %14 = vsyncpa [#allocation7], 0
    %s15 = scalar_lea.sflag [#allocation7], 1
    %16 = vsyncpa %s15, 0
    loop: start=0, step=1, limit=4
    $region2: #{tpu_custom_call.1} parent=1 // loop_pre_header
      _
    $region3: #{tpu_custom_call.1} parent=1 // loop_header
      %s18 = sphi 0, %s22
      %p19 = scmp.ge.s32.totalorder %s18, 4
      %s28 = sphi 0, %s30
      %s31 = sphi 0, %s28
      %s32 = sphi 0, %s31
      %s48 = sphi 0, %s32
      %s52 = sphi 0, %s52
      %s54 = sphi 0, %s52
      %s55 = sphi 0, %s54
      %s69 = sphi 0, %s55
      %s73 = sphi 0, %s73
      %s75 = sphi 0, %s73
      %s76 = sphi 0, %s75
      %s90 = sphi 0, %s76
      %s94 = sphi 0, %s94
      %s96 = sphi 0, %s94
      %s97 = sphi 0, %s96
      %s111 = sphi 0, %s97
      %s115 = sphi 0, %s115
      %s117 = sphi 0, %s115
      %s118 = sphi 0, %s117
      %s132 = sphi 0, %s118
      %s136 = sphi 0, %s136
      %s138 = sphi 0, %s136
      %s139 = sphi 0, %s138
      %s153 = sphi 0, %s139
      %s159 = sphi 0, %s161
      %s162 = sphi 0, %s159
      %s163 = sphi 0, %s162
      %s179 = sphi 0, %s163
    $region4: #{tpu_custom_call.1} parent=1 // loop_header_branch
      %21 = sbr.rel (%p19) target = $region8
    $region5: #{tpu_custom_call.1} parent=1 // loop_body
      %s23 = ssub.s32 %s18, 1
      %s24 = ssub.s32 %s18, 2
      %s25 = sadd.s32 %s18, 1
      %s26 = ssub.s32 %s18, %s25
      %p27 = scmp.eq.s32.totalorder %s26, 0
      %s29 = sadd.s32 %s28, 1
      %s30 = scalar_select %p27, %s28, %s29
      %p33 = pneg %p27
      %p34 = scmp.eq.s32.totalorder %s18, 1
      %p35 = por %p33, %p34
      %p36 = scmp.ne.s32.totalorder %s28, %s31
      %p37 = scmp.eq.s32.totalorder %s18, 0
      %p38 = por %p36, %p37
      %p39 = scmp.ne.s32.totalorder %s28, %s31
      %p40 = scmp.eq.s32.totalorder %s23, 1
      %p41 = por %p39, %p40
      %p42 = scmp.ne.s32.totalorder %s31, %s32
      %p43 = scmp.eq.s32.totalorder %s23, 0
      %p44 = por %p42, %p43
      %p45 = scmp.ne.s32.totalorder %s31, %s32
      %p46 = scmp.eq.s32.totalorder %s24, 1
      %p47 = por %p45, %p46
      %p49 = scmp.ne.s32.totalorder %s32, %s48
      %p50 = scmp.eq.s32.totalorder %s24, 0
      %p51 = por %p49, %p50
      %s53 = sadd.s32 %s52, 1
      %p56 = scmp.eq.s32.totalorder %s18, 1
      %p57 = scmp.ne.s32.totalorder %s52, %s54
      %p58 = scmp.eq.s32.totalorder %s18, 0
      %p59 = por %p57, %p58
      %p60 = scmp.ne.s32.totalorder %s52, %s54
      %p61 = scmp.eq.s32.totalorder %s23, 1
      %p62 = por %p60, %p61
      %p63 = scmp.ne.s32.totalorder %s54, %s55
      %p64 = scmp.eq.s32.totalorder %s23, 0
      %p65 = por %p63, %p64
      %p66 = scmp.ne.s32.totalorder %s54, %s55
      %p67 = scmp.eq.s32.totalorder %s24, 1
      %p68 = por %p66, %p67
      %p70 = scmp.ne.s32.totalorder %s55, %s69
      %p71 = scmp.eq.s32.totalorder %s24, 0
      %p72 = por %p70, %p71
      %s74 = sadd.s32 %s73, 1
      %p77 = scmp.eq.s32.totalorder %s18, 1
      %p78 = scmp.ne.s32.totalorder %s73, %s75
      %p79 = scmp.eq.s32.totalorder %s18, 0
      %p80 = por %p78, %p79
      %p81 = scmp.ne.s32.totalorder %s73, %s75
      %p82 = scmp.eq.s32.totalorder %s23, 1
      %p83 = por %p81, %p82
      %p84 = scmp.ne.s32.totalorder %s75, %s76
      %p85 = scmp.eq.s32.totalorder %s23, 0
      %p86 = por %p84, %p85
      %p87 = scmp.ne.s32.totalorder %s75, %s76
      %p88 = scmp.eq.s32.totalorder %s24, 1
      %p89 = por %p87, %p88
      %p91 = scmp.ne.s32.totalorder %s76, %s90
      %p92 = scmp.eq.s32.totalorder %s24, 0
      %p93 = por %p91, %p92
      %s95 = sadd.s32 %s94, 1
      %p98 = scmp.eq.s32.totalorder %s18, 1
      %p99 = scmp.ne.s32.totalorder %s94, %s96
      %p100 = scmp.eq.s32.totalorder %s18, 0
      %p101 = por %p99, %p100
      %p102 = scmp.ne.s32.totalorder %s94, %s96
      %p103 = scmp.eq.s32.totalorder %s23, 1
      %p104 = por %p102, %p103
      %p105 = scmp.ne.s32.totalorder %s96, %s97
      %p106 = scmp.eq.s32.totalorder %s23, 0
      %p107 = por %p105, %p106
      %p108 = scmp.ne.s32.totalorder %s96, %s97
      %p109 = scmp.eq.s32.totalorder %s24, 1
      %p110 = por %p108, %p109
      %p112 = scmp.ne.s32.totalorder %s97, %s111
      %p113 = scmp.eq.s32.totalorder %s24, 0
      %p114 = por %p112, %p113
      %s116 = sadd.s32 %s115, 1
      %p119 = scmp.eq.s32.totalorder %s18, 1
      %p120 = scmp.ne.s32.totalorder %s115, %s117
      %p121 = scmp.eq.s32.totalorder %s18, 0
      %p122 = por %p120, %p121
      %p123 = scmp.ne.s32.totalorder %s115, %s117
      %p124 = scmp.eq.s32.totalorder %s23, 1
      %p125 = por %p123, %p124
      %p126 = scmp.ne.s32.totalorder %s117, %s118
      %p127 = scmp.eq.s32.totalorder %s23, 0
      %p128 = por %p126, %p127
      %p129 = scmp.ne.s32.totalorder %s117, %s118
      %p130 = scmp.eq.s32.totalorder %s24, 1
      %p131 = por %p129, %p130
      %p133 = scmp.ne.s32.totalorder %s118, %s132
      %p134 = scmp.eq.s32.totalorder %s24, 0
      %p135 = por %p133, %p134
      %s137 = sadd.s32 %s136, 1
      %p140 = scmp.eq.s32.totalorder %s18, 1
      %p141 = scmp.ne.s32.totalorder %s136, %s138
      %p142 = scmp.eq.s32.totalorder %s18, 0
      %p143 = por %p141, %p142
      %p144 = scmp.ne.s32.totalorder %s136, %s138
      %p145 = scmp.eq.s32.totalorder %s23, 1
      %p146 = por %p144, %p145
      %p147 = scmp.ne.s32.totalorder %s138, %s139
      %p148 = scmp.eq.s32.totalorder %s23, 0
      %p149 = por %p147, %p148
      %p150 = scmp.ne.s32.totalorder %s138, %s139
      %p151 = scmp.eq.s32.totalorder %s24, 1
      %p152 = por %p150, %p151
      %p154 = scmp.ne.s32.totalorder %s139, %s153
      %p155 = scmp.eq.s32.totalorder %s24, 0
      %p156 = por %p154, %p155
      %s157 = ssub.s32 %s18, %s25
      %p158 = scmp.eq.s32.totalorder %s157, 0
      %s160 = sadd.s32 %s159, 1
      %s161 = scalar_select %p158, %s159, %s160
      %p164 = pneg %p158
      %p165 = scmp.eq.s32.totalorder %s18, 1
      %p166 = por %p164, %p165
      %p167 = scmp.ne.s32.totalorder %s159, %s162
      %p168 = scmp.eq.s32.totalorder %s18, 0
      %p169 = por %p167, %p168
      %p170 = scmp.ne.s32.totalorder %s159, %s162
      %p171 = scmp.eq.s32.totalorder %s23, 1
      %p172 = por %p170, %p171
      %p173 = scmp.ne.s32.totalorder %s162, %s163
      %p174 = scmp.eq.s32.totalorder %s23, 0
      %p175 = por %p173, %p174
      %p176 = scmp.ne.s32.totalorder %s162, %s163
      %p177 = scmp.eq.s32.totalorder %s24, 1
      %p178 = por %p176, %p177
      %p180 = scmp.ne.s32.totalorder %s163, %s179
      %p181 = scmp.eq.s32.totalorder %s24, 0
      %p182 = por %p180, %p181
      %p183 = scmp.le.s32.totalorder 1, %s18
      %p184 = scmp.lt.s32.totalorder %s18, 3
      %p185 = pnand %p183, %p184
      %p186 = pneg %p185
      // Predicated region
      $region9: #{tpu_custom_call.1} parent=5 // pred_check
        _
      $region10: #{tpu_custom_call.1} parent=5 // pred_check_branch
        %188 = sbr.rel (%p185) target = $region12
      $region11: #{tpu_custom_call.1} parent=5 // pred_region
        %s189 = ssub.s32 %s18, 1
        // Predicated region
        $region13: #{tpu_custom_call.1} parent=11 // pred_check
          %p190 = pneg %p65
        $region14: #{tpu_custom_call.1} parent=11 // pred_check_branch
          %192 = sbr.rel (%p190) target = $region16
        $region15: #{tpu_custom_call.1} parent=11 // pred_region
          _
        $region16: #{tpu_custom_call.1} parent=11 // pred_fallthru
          _
        // Predicated region
        $region17: #{tpu_custom_call.1} parent=11 // pred_check
          %p193 = pneg %p86
        $region18: #{tpu_custom_call.1} parent=11 // pred_check_branch
          %195 = sbr.rel (%p193) target = $region20
        $region19: #{tpu_custom_call.1} parent=11 // pred_region
          _
        $region20: #{tpu_custom_call.1} parent=11 // pred_fallthru
          _
        // Predicated region
        $region21: #{tpu_custom_call.1} parent=11 // pred_check
          %p196 = pneg %p107
        $region22: #{tpu_custom_call.1} parent=11 // pred_check_branch
          %198 = sbr.rel (%p196) target = $region24
        $region23: #{tpu_custom_call.1} parent=11 // pred_region
          _
        $region24: #{tpu_custom_call.1} parent=11 // pred_fallthru
          _
        // Predicated region
        $region25: #{tpu_custom_call.1} parent=11 // pred_check
          %p199 = pneg %p128
        $region26: #{tpu_custom_call.1} parent=11 // pred_check_branch
          %201 = sbr.rel (%p199) target = $region28
        $region27: #{tpu_custom_call.1} parent=11 // pred_region
          _
        $region28: #{tpu_custom_call.1} parent=11 // pred_fallthru
          _
        // Predicated region
        $region29: #{tpu_custom_call.1} parent=11 // pred_check
          %p202 = pneg %p149
        $region30: #{tpu_custom_call.1} parent=11 // pred_check_branch
          %204 = sbr.rel (%p202) target = $region32
        $region31: #{tpu_custom_call.1} parent=11 // pred_region
          _
        $region32: #{tpu_custom_call.1} parent=11 // pred_fallthru
          _
      $region12: #{tpu_custom_call.1} parent=5 // pred_fallthru
        _
      %p205 = scmp.lt.s32.totalorder %s18, 2
      // Predicated region
      $region33: #{tpu_custom_call.1} parent=5 // pred_check
        %p206 = pneg %p205
      $region34: #{tpu_custom_call.1} parent=5 // pred_check_branch
        %208 = sbr.rel (%p206) target = $region36
      $region35: #{tpu_custom_call.1} parent=5 // pred_region
        // Predicated region
        $region37: #{tpu_custom_call.1} parent=35 // pred_check
          %p209 = pneg %p38
        $region38: #{tpu_custom_call.1} parent=35 // pred_check_branch
          %211 = sbr.rel (%p209) target = $region40
        $region39: #{tpu_custom_call.1} parent=35 // pred_region
          %s212 = sand.u32 %s28, 1
          %s213 = scalar_lea.sflag [#allocation6], %s212
          %s214 = sand.u32 %s28, 1
          %s215 = smul.addr %s214, 28
          %s216 = scalar_lea.vmem [#allocation5], %s215
          %s218 = ssub.s32 448, 448
          %219 = vsyncadd %s213, %s218
          %s220 = smul.addr %s18, 7
          %s221 = smul.addr %s220, 64
          %s222 = scalar_lea.hbm %s0, %s221
          %s224 = sshll.u32 %s216, 4
          %s225 = int_to_ptr.vmem [resolvable:$true] %s224
          %227 = dma.hbm_to_vmem [thread:$0]  %s222, 448, %s225, %s213
        $region40: #{tpu_custom_call.1} parent=35 // pred_fallthru
          _
      $region36: #{tpu_custom_call.1} parent=5 // pred_fallthru
        _
      %p228 = scmp.le.s32.totalorder 1, %s18
      %p229 = scmp.lt.s32.totalorder %s18, 3
      %p230 = pnand %p228, %p229
      %p231 = pneg %p230
      // Predicated region
      $region41: #{tpu_custom_call.1} parent=5 // pred_check
        _
      $region42: #{tpu_custom_call.1} parent=5 // pred_check_branch
        %233 = sbr.rel (%p230) target = $region44
      $region43: #{tpu_custom_call.1} parent=5 // pred_region
        %s234 = ssub.s32 %s18, 1
        %s235 = sand.u32 %s31, 1
        %s236 = scalar_lea.sflag [#allocation6], %s235
        %s237 = sand.u32 %s31, 1
        %s238 = smul.addr %s237, 28
        %s239 = scalar_lea.vmem [#allocation5], %s238
        // Predicated region
        $region45: #{tpu_custom_call.1} parent=43 // pred_check
          %p240 = pneg %p44
        $region46: #{tpu_custom_call.1} parent=43 // pred_check_branch
          %242 = sbr.rel (%p240) target = $region48
        $region47: #{tpu_custom_call.1} parent=43 // pred_region
          %243 = dma.done %s236, 448
        $region48: #{tpu_custom_call.1} parent=43 // pred_fallthru
          _
        %s244 = sand.u32 %s31, 1
        %s245 = scalar_lea.sflag [#allocation6], %s244
        %s246 = sand.u32 %s31, 1
        %s247 = smul.addr %s246, 28
        %s248 = scalar_lea.vmem [#allocation5], %s247
        %p249 = pneg %p44
        %p250 = pneg %p41
        %p251 = pneg %p65
        %p252 = pneg %p62
        %p253 = pneg %p86
        %p254 = pneg %p83
        %p255 = pneg %p107
        %p256 = pneg %p104
        %p257 = pneg %p128
        %p258 = pneg %p125
        %p259 = pneg %p149
        %p260 = pneg %p146
        %p261 = pneg %p175
        %p262 = pneg %p172
        %s263 = sand.u32 %s162, 1
        %s264 = scalar_lea.sflag [#allocation7], %s263
        %s265 = sand.u32 %s162, 1
        %s266 = smul.addr %s265, 20
        %s267 = scalar_lea.vmem [#allocation8], %s266
        %v268 = vld [vmem:[%s239] sm:$0xff]
        %v269 = vld [vmem:[%s239 + $0x8] sm:$0xff]
        %v270 = vld [vmem:[%s239 + $0x10] sm:$0xff]
        %v274 = vcombine.high %v268, %v268
        %v275 = vcombine.high %v269, %v269
        %v276 = vcombine.high %v270, %v270
        %277 = vrot.lane.b32.xlu0 %v268, 23
        %v278 = vpop.permute.xlu0 %277
        %279 = vrot.lane.b32.xlu0 %v274, 23
        %v280 = vpop.permute.xlu0 %279
        %281 = vrot.lane.b32.xlu0 %v269, 23
        %v282 = vpop.permute.xlu0 %281
        %283 = vrot.lane.b32.xlu0 %v275, 23
        %v284 = vpop.permute.xlu0 %283
        %285 = vrot.lane.b32.xlu0 %v270, 23
        %v286 = vpop.permute.xlu0 %285
        %287 = vrot.lane.b32.xlu0 %v276, 23
        %v288 = vpop.permute.xlu0 %287
        %vm289 = vcmask 187392
        %v290 = vsel %vm289, %v278, %v280
        %v291 = vsel %vm289, %v280, %v282
        %v292 = vsel %vm289, %v282, %v284
        %v293 = vsel %vm289, %v284, %v286
        %v294 = vsel %vm289, %v286, %v288
        %300 = vst [vmem:[#allocation2] sm:$0xf] %v290
        %301 = vst [vmem:[#allocation2 + $0x8] sm:$0xf] %v291
        %302 = vst [vmem:[#allocation2 + $0x10] sm:$0xf] %v292
        %303 = vst [vmem:[#allocation2 + $0x18] sm:$0xf] %v293
        %304 = vst [vmem:[#allocation2 + $0x20] sm:$0xf] %v294
        %v305 = vld [vmem:[%s239] sm:$0xff]
        %v306 = vld [vmem:[%s239 + $0x8] sm:$0xff]
        %v307 = vld [vmem:[%s239 + $0x10] sm:$0xff]
        %v311 = vcombine.low %v305, %v305
        %v312 = vcombine.low %v306, %v306
        %v313 = vcombine.low %v307, %v307
        %314 = vrot.lane.b32.xlu0 %v311, 22
        %v315 = vpop.permute.xlu0 %314
        %316 = vrot.lane.b32.xlu0 %v305, 22
        %v317 = vpop.permute.xlu0 %316
        %318 = vrot.lane.b32.xlu0 %v312, 22
        %v319 = vpop.permute.xlu0 %318
        %320 = vrot.lane.b32.xlu0 %v306, 22
        %v321 = vpop.permute.xlu0 %320
        %322 = vrot.lane.b32.xlu0 %v313, 22
        %v323 = vpop.permute.xlu0 %322
        %324 = vrot.lane.b32.xlu0 %v307, 22
        %v325 = vpop.permute.xlu0 %324
        %vm326 = vcmask 179200
        %v327 = vsel %vm326, %v315, %v317
        %v328 = vsel %vm326, %v317, %v319
        %v329 = vsel %vm326, %v319, %v321
        %v330 = vsel %vm326, %v321, %v323
        %v331 = vsel %vm326, %v323, %v325
        %337 = vst [vmem:[#allocation2] sm:$0xf0] %v327
        %338 = vst [vmem:[#allocation2 + $0x8] sm:$0xf0] %v328
        %339 = vst [vmem:[#allocation2 + $0x10] sm:$0xf0] %v329
        %340 = vst [vmem:[#allocation2 + $0x18] sm:$0xf0] %v330
        %341 = vst [vmem:[#allocation2 + $0x20] sm:$0xf0] %v331
        %v342 = vld [vmem:[%s239] sm:$0xff]
        %v343 = vld [vmem:[%s239 + $0x8] sm:$0xff]
        %v344 = vld [vmem:[%s239 + $0x10] sm:$0xff]
        %v348 = vcombine.high %v342, %v342
        %v349 = vcombine.high %v343, %v343
        %v350 = vcombine.high %v344, %v344
        %351 = vrot.lane.b32.xlu0 %v342, 21
        %v352 = vpop.permute.xlu0 %351
        %353 = vrot.lane.b32.xlu0 %v348, 21
        %v354 = vpop.permute.xlu0 %353
        %355 = vrot.lane.b32.xlu0 %v343, 21
        %v356 = vpop.permute.xlu0 %355
        %357 = vrot.lane.b32.xlu0 %v349, 21
        %v358 = vpop.permute.xlu0 %357
        %359 = vrot.lane.b32.xlu0 %v344, 21
        %v360 = vpop.permute.xlu0 %359
        %361 = vrot.lane.b32.xlu0 %v350, 21
        %v362 = vpop.permute.xlu0 %361
        %vm363 = vcmask 171008
        %v364 = vsel %vm363, %v352, %v354
        %v365 = vsel %vm363, %v354, %v356
        %v366 = vsel %vm363, %v356, %v358
        %v367 = vsel %vm363, %v358, %v360
        %v368 = vsel %vm363, %v360, %v362
        %374 = vst [vmem:[#allocation2 + $0x28] sm:$0xf] %v364
        %375 = vst [vmem:[#allocation2 + $0x30] sm:$0xf] %v365
        %376 = vst [vmem:[#allocation2 + $0x38] sm:$0xf] %v366
        %377 = vst [vmem:[#allocation2 + $0x40] sm:$0xf] %v367
        %378 = vst [vmem:[#allocation2 + $0x48] sm:$0xf] %v368
        %v379 = vld [vmem:[%s239] sm:$0xff]
        %v380 = vld [vmem:[%s239 + $0x8] sm:$0xff]
        %v381 = vld [vmem:[%s239 + $0x10] sm:$0xff]
        %v385 = vcombine.low %v379, %v379
        %v386 = vcombine.low %v380, %v380
        %v387 = vcombine.low %v381, %v381
        %388 = vrot.lane.b32.xlu0 %v385, 1
        %v389 = vpop.permute.xlu0 %388
        %390 = vrot.lane.b32.xlu0 %v379, 1
        %v391 = vpop.permute.xlu0 %390
        %392 = vrot.lane.b32.xlu0 %v386, 1
        %v393 = vpop.permute.xlu0 %392
        %394 = vrot.lane.b32.xlu0 %v380, 1
        %v395 = vpop.permute.xlu0 %394
        %396 = vrot.lane.b32.xlu0 %v387, 1
        %v397 = vpop.permute.xlu0 %396
        %398 = vrot.lane.b32.xlu0 %v381, 1
        %v399 = vpop.permute.xlu0 %398
        %vm400 = vcmask 7168
        %v401 = vsel %vm400, %v389, %v391
        %v402 = vsel %vm400, %v391, %v393
        %v403 = vsel %vm400, %v393, %v395
        %v404 = vsel %vm400, %v395, %v397
        %v405 = vsel %vm400, %v397, %v399
        %411 = vst [vmem:[#allocation2 + $0x28] sm:$0xf0] %v401
        %412 = vst [vmem:[#allocation2 + $0x30] sm:$0xf0] %v402
        %413 = vst [vmem:[#allocation2 + $0x38] sm:$0xf0] %v403
        %414 = vst [vmem:[#allocation2 + $0x40] sm:$0xf0] %v404
        %415 = vst [vmem:[#allocation2 + $0x48] sm:$0xf0] %v405
        %v416 = vld [vmem:[%s239 + $0x4] sm:$0xff]
        %v417 = vld [vmem:[%s239 + $0xc] sm:$0xff]
        %v418 = vld [vmem:[%s239 + $0x14] sm:$0xf]
        %v421 = vcombine.high %v416, %v416
        %v422 = vcombine.high %v417, %v417
        %425 = vst [vmem:[#allocation2 + $0x50] sm:$0xf] %v416
        %426 = vst [vmem:[#allocation2 + $0x58] sm:$0xf] %v421
        %427 = vst [vmem:[#allocation2 + $0x60] sm:$0xf] %v417
        %428 = vst [vmem:[#allocation2 + $0x68] sm:$0xf] %v422
        %429 = vst [vmem:[#allocation2 + $0x70] sm:$0xf] %v418
        %v430 = vld [vmem:[%s239 + $0x4] sm:$0xff]
        %v431 = vld [vmem:[%s239 + $0xc] sm:$0xff]
        %v432 = vld [vmem:[%s239 + $0x14] sm:$0xff]
        %v436 = vcombine.low %v430, %v430
        %v437 = vcombine.low %v431, %v431
        %v438 = vcombine.low %v432, %v432
        %439 = vrot.lane.b32.xlu0 %v436, 127
        %v440 = vpop.permute.xlu0 %439
        %441 = vrot.lane.b32.xlu0 %v430, 127
        %v442 = vpop.permute.xlu0 %441
        %443 = vrot.lane.b32.xlu0 %v437, 127
        %v444 = vpop.permute.xlu0 %443
        %445 = vrot.lane.b32.xlu0 %v431, 127
        %v446 = vpop.permute.xlu0 %445
        %447 = vrot.lane.b32.xlu0 %v438, 127
        %v448 = vpop.permute.xlu0 %447
        %449 = vrot.lane.b32.xlu0 %v432, 127
        %v450 = vpop.permute.xlu0 %449
        %vm451 = vcmask 1039360
        %v452 = vsel %vm451, %v440, %v442
        %v453 = vsel %vm451, %v442, %v444
        %v454 = vsel %vm451, %v444, %v446
        %v455 = vsel %vm451, %v446, %v448
        %v456 = vsel %vm451, %v448, %v450
        %462 = vst [vmem:[#allocation2 + $0x50] sm:$0xf0] %v452
        %463 = vst [vmem:[#allocation2 + $0x58] sm:$0xf0] %v453
        %464 = vst [vmem:[#allocation2 + $0x60] sm:$0xf0] %v454
        %465 = vst [vmem:[#allocation2 + $0x68] sm:$0xf0] %v455
        %466 = vst [vmem:[#allocation2 + $0x70] sm:$0xf0] %v456
        %v467 = vld [vmem:[%s239 + $0x4] sm:$0xff]
        %v468 = vld [vmem:[%s239 + $0xc] sm:$0xff]
        %v469 = vld [vmem:[%s239 + $0x14] sm:$0xff]
        %v473 = vcombine.high %v467, %v467
        %v474 = vcombine.high %v468, %v468
        %v475 = vcombine.high %v469, %v469
        %476 = vrot.lane.b32.xlu0 %v467, 107
        %v477 = vpop.permute.xlu0 %476
        %478 = vrot.lane.b32.xlu0 %v473, 107
        %v479 = vpop.permute.xlu0 %478
        %480 = vrot.lane.b32.xlu0 %v468, 107
        %v481 = vpop.permute.xlu0 %480
        %482 = vrot.lane.b32.xlu0 %v474, 107
        %v483 = vpop.permute.xlu0 %482
        %484 = vrot.lane.b32.xlu0 %v469, 107
        %v485 = vpop.permute.xlu0 %484
        %486 = vrot.lane.b32.xlu0 %v475, 107
        %v487 = vpop.permute.xlu0 %486
        %vm488 = vcmask 875520
        %v489 = vsel %vm488, %v477, %v479
        %v490 = vsel %vm488, %v479, %v481
        %v491 = vsel %vm488, %v481, %v483
        %v492 = vsel %vm488, %v483, %v485
        %v493 = vsel %vm488, %v485, %v487
        %499 = vst [vmem:[#allocation2 + $0x78] sm:$0xf] %v489
        %500 = vst [vmem:[#allocation2 + $0x80] sm:$0xf] %v490
        %501 = vst [vmem:[#allocation2 + $0x88] sm:$0xf] %v491
        %502 = vst [vmem:[#allocation2 + $0x90] sm:$0xf] %v492
        %503 = vst [vmem:[#allocation2 + $0x98] sm:$0xf] %v493
        %v504 = vld [vmem:[%s239 + $0x4] sm:$0xff]
        %v505 = vld [vmem:[%s239 + $0xc] sm:$0xff]
        %v506 = vld [vmem:[%s239 + $0x14] sm:$0xff]
        %v510 = vcombine.low %v504, %v504
        %v511 = vcombine.low %v505, %v505
        %v512 = vcombine.low %v506, %v506
        %513 = vrot.lane.b32.xlu0 %v510, 106
        %v514 = vpop.permute.xlu0 %513
        %515 = vrot.lane.b32.xlu0 %v504, 106
        %v516 = vpop.permute.xlu0 %515
        %517 = vrot.lane.b32.xlu0 %v511, 106
        %v518 = vpop.permute.xlu0 %517
        %519 = vrot.lane.b32.xlu0 %v505, 106
        %v520 = vpop.permute.xlu0 %519
        %521 = vrot.lane.b32.xlu0 %v512, 106
        %v522 = vpop.permute.xlu0 %521
        %523 = vrot.lane.b32.xlu0 %v506, 106
        %v524 = vpop.permute.xlu0 %523
        %vm525 = vcmask 867328
        %v526 = vsel %vm525, %v514, %v516
        %v527 = vsel %vm525, %v516, %v518
        %v528 = vsel %vm525, %v518, %v520
        %v529 = vsel %vm525, %v520, %v522
        %v530 = vsel %vm525, %v522, %v524
        %536 = vst [vmem:[#allocation2 + $0x78] sm:$0xf0] %v526
        %537 = vst [vmem:[#allocation2 + $0x80] sm:$0xf0] %v527
        %538 = vst [vmem:[#allocation2 + $0x88] sm:$0xf0] %v528
        %539 = vst [vmem:[#allocation2 + $0x90] sm:$0xf0] %v529
        %540 = vst [vmem:[#allocation2 + $0x98] sm:$0xf0] %v530
        %v541 = vld [vmem:[%s239 + $0x4] sm:$0xff]
        %v542 = vld [vmem:[%s239 + $0xc] sm:$0xff]
        %v543 = vld [vmem:[%s239 + $0x14] sm:$0xff]
        %v547 = vcombine.high %v541, %v541
        %v548 = vcombine.high %v542, %v542
        %v549 = vcombine.high %v543, %v543
        %550 = vrot.lane.b32.xlu0 %v541, 105
        %v551 = vpop.permute.xlu0 %550
        %552 = vrot.lane.b32.xlu0 %v547, 105
        %v553 = vpop.permute.xlu0 %552
        %554 = vrot.lane.b32.xlu0 %v542, 105
        %v555 = vpop.permute.xlu0 %554
        %556 = vrot.lane.b32.xlu0 %v548, 105
        %v557 = vpop.permute.xlu0 %556
        %558 = vrot.lane.b32.xlu0 %v543, 105
        %v559 = vpop.permute.xlu0 %558
        %560 = vrot.lane.b32.xlu0 %v549, 105
        %v561 = vpop.permute.xlu0 %560
        %vm562 = vcmask 859136
        %v563 = vsel %vm562, %v551, %v553
        %v564 = vsel %vm562, %v553, %v555
        %v565 = vsel %vm562, %v555, %v557
        %v566 = vsel %vm562, %v557, %v559
        %v567 = vsel %vm562, %v559, %v561
        %573 = vst [vmem:[#allocation2 + $0xa0] sm:$0xf] %v563
        %574 = vst [vmem:[#allocation2 + $0xa8] sm:$0xf] %v564
        %575 = vst [vmem:[#allocation2 + $0xb0] sm:$0xf] %v565
        %576 = vst [vmem:[#allocation2 + $0xb8] sm:$0xf] %v566
        %577 = vst [vmem:[#allocation2 + $0xc0] sm:$0xf] %v567
        %v578 = vld [vmem:[%s239] sm:$0xff]
        %v579 = vld [vmem:[%s239 + $0x8] sm:$0xff]
        %v580 = vld [vmem:[%s239 + $0x10] sm:$0xff]
        %v584 = vcombine.low %v578, %v578
        %v585 = vcombine.low %v579, %v579
        %v586 = vcombine.low %v580, %v580
        %587 = vrot.lane.b32.xlu0 %v584, 46
        %v588 = vpop.permute.xlu0 %587
        %589 = vrot.lane.b32.xlu0 %v578, 46
        %v590 = vpop.permute.xlu0 %589
        %591 = vrot.lane.b32.xlu0 %v585, 46
        %v592 = vpop.permute.xlu0 %591
        %593 = vrot.lane.b32.xlu0 %v579, 46
        %v594 = vpop.permute.xlu0 %593
        %595 = vrot.lane.b32.xlu0 %v586, 46
        %v596 = vpop.permute.xlu0 %595
        %597 = vrot.lane.b32.xlu0 %v580, 46
        %v598 = vpop.permute.xlu0 %597
        %vm599 = vcmask 375808
        %v600 = vsel %vm599, %v588, %v590
        %v601 = vsel %vm599, %v590, %v592
        %v602 = vsel %vm599, %v592, %v594
        %v603 = vsel %vm599, %v594, %v596
        %v604 = vsel %vm599, %v596, %v598
        %610 = vst [vmem:[#allocation2 + $0xa0] sm:$0xf0] %v600
        %611 = vst [vmem:[#allocation2 + $0xa8] sm:$0xf0] %v601
        %612 = vst [vmem:[#allocation2 + $0xb0] sm:$0xf0] %v602
        %613 = vst [vmem:[#allocation2 + $0xb8] sm:$0xf0] %v603
        %614 = vst [vmem:[#allocation2 + $0xc0] sm:$0xf0] %v604
        %v615 = vld [vmem:[%s239] sm:$0xff]
        %v616 = vld [vmem:[%s239 + $0x8] sm:$0xff]
        %v617 = vld [vmem:[%s239 + $0x10] sm:$0xff]
        %v621 = vcombine.high %v615, %v615
        %v622 = vcombine.high %v616, %v616
        %v623 = vcombine.high %v617, %v617
        %624 = vrot.lane.b32.xlu0 %v615, 44
        %v625 = vpop.permute.xlu0 %624
        %626 = vrot.lane.b32.xlu0 %v621, 44
        %v627 = vpop.permute.xlu0 %626
        %628 = vrot.lane.b32.xlu0 %v616, 44
        %v629 = vpop.permute.xlu0 %628
        %630 = vrot.lane.b32.xlu0 %v622, 44
        %v631 = vpop.permute.xlu0 %630
        %632 = vrot.lane.b32.xlu0 %v617, 44
        %v633 = vpop.permute.xlu0 %632
        %634 = vrot.lane.b32.xlu0 %v623, 44
        %v635 = vpop.permute.xlu0 %634
        %vm636 = vcmask 359424
        %v637 = vsel %vm636, %v625, %v627
        %v638 = vsel %vm636, %v627, %v629
        %v639 = vsel %vm636, %v629, %v631
        %v640 = vsel %vm636, %v631, %v633
        %v641 = vsel %vm636, %v633, %v635
        %647 = vst [vmem:[#allocation2 + $0xc8] sm:$0xf] %v637
        %648 = vst [vmem:[#allocation2 + $0xd0] sm:$0xf] %v638
        %649 = vst [vmem:[#allocation2 + $0xd8] sm:$0xf] %v639
        %650 = vst [vmem:[#allocation2 + $0xe0] sm:$0xf] %v640
        %651 = vst [vmem:[#allocation2 + $0xe8] sm:$0xf] %v641
        %v652 = vld [vmem:[%s239] sm:$0xff]
        %v653 = vld [vmem:[%s239 + $0x8] sm:$0xff]
        %v654 = vld [vmem:[%s239 + $0x10] sm:$0xff]
        %v658 = vcombine.low %v652, %v652
        %v659 = vcombine.low %v653, %v653
        %v660 = vcombine.low %v654, %v654
        %661 = vrot.lane.b32.xlu0 %v658, 42
        %v662 = vpop.permute.xlu0 %661
        %663 = vrot.lane.b32.xlu0 %v652, 42
        %v664 = vpop.permute.xlu0 %663
        %665 = vrot.lane.b32.xlu0 %v659, 42
        %v666 = vpop.permute.xlu0 %665
        %667 = vrot.lane.b32.xlu0 %v653, 42
        %v668 = vpop.permute.xlu0 %667
        %669 = vrot.lane.b32.xlu0 %v660, 42
        %v670 = vpop.permute.xlu0 %669
        %671 = vrot.lane.b32.xlu0 %v654, 42
        %v672 = vpop.permute.xlu0 %671
        %vm673 = vcmask 343040
        %v674 = vsel %vm673, %v662, %v664
        %v675 = vsel %vm673, %v664, %v666
        %v676 = vsel %vm673, %v666, %v668
        %v677 = vsel %vm673, %v668, %v670
        %v678 = vsel %vm673, %v670, %v672
        %684 = vst [vmem:[#allocation2 + $0xc8] sm:$0xf0] %v674
        %685 = vst [vmem:[#allocation2 + $0xd0] sm:$0xf0] %v675
        %686 = vst [vmem:[#allocation2 + $0xd8] sm:$0xf0] %v676
        %687 = vst [vmem:[#allocation2 + $0xe0] sm:$0xf0] %v677
        %688 = vst [vmem:[#allocation2 + $0xe8] sm:$0xf0] %v678
        %v689 = vld [vmem:[%s239] sm:$0xff]
        %v690 = vld [vmem:[%s239 + $0x8] sm:$0xff]
        %v691 = vld [vmem:[%s239 + $0x10] sm:$0xff]
        %v695 = vcombine.high %v689, %v689
        %v696 = vcombine.high %v690, %v690
        %v697 = vcombine.high %v691, %v691
        %698 = vrot.lane.b32.xlu0 %v689, 2
        %v699 = vpop.permute.xlu0 %698
        %700 = vrot.lane.b32.xlu0 %v695, 2
        %v701 = vpop.permute.xlu0 %700
        %702 = vrot.lane.b32.xlu0 %v690, 2
        %v703 = vpop.permute.xlu0 %702
        %704 = vrot.lane.b32.xlu0 %v696, 2
        %v705 = vpop.permute.xlu0 %704
        %706 = vrot.lane.b32.xlu0 %v691, 2
        %v707 = vpop.permute.xlu0 %706
        %708 = vrot.lane.b32.xlu0 %v697, 2
        %v709 = vpop.permute.xlu0 %708
        %vm710 = vcmask 15360
        %v711 = vsel %vm710, %v699, %v701
        %v712 = vsel %vm710, %v701, %v703
        %v713 = vsel %vm710, %v703, %v705
        %v714 = vsel %vm710, %v705, %v707
        %v715 = vsel %vm710, %v707, %v709
        %721 = vst [vmem:[#allocation2 + $0xf0] sm:$0xf] %v711
        %722 = vst [vmem:[#allocation2 + $0xf8] sm:$0xf] %v712
        %723 = vst [vmem:[#allocation2 + $0x100] sm:$0xf] %v713
        %724 = vst [vmem:[#allocation2 + $0x108] sm:$0xf] %v714
        %725 = vst [vmem:[#allocation2 + $0x110] sm:$0xf] %v715
        %v726 = vld [vmem:[%s239 + $0x4] sm:$0xff]
        %v727 = vld [vmem:[%s239 + $0xc] sm:$0xff]
        %v728 = vld [vmem:[%s239 + $0x14] sm:$0xf]
        %v732 = vcombine.low %v726, %v726
        %v733 = vcombine.low %v727, %v727
        %v734 = vcombine.low %v728, %v728
        %738 = vst [vmem:[#allocation2 + $0xf0] sm:$0xf0] %v732
        %739 = vst [vmem:[#allocation2 + $0xf8] sm:$0xf0] %v726
        %740 = vst [vmem:[#allocation2 + $0x100] sm:$0xf0] %v733
        %741 = vst [vmem:[#allocation2 + $0x108] sm:$0xf0] %v727
        %742 = vst [vmem:[#allocation2 + $0x110] sm:$0xf0] %v734
        %v743 = vld [vmem:[%s239 + $0x4] sm:$0xff]
        %v744 = vld [vmem:[%s239 + $0xc] sm:$0xff]
        %v745 = vld [vmem:[%s239 + $0x14] sm:$0xff]
        %v749 = vcombine.high %v743, %v743
        %v750 = vcombine.high %v744, %v744
        %v751 = vcombine.high %v745, %v745
        %752 = vrot.lane.b32.xlu0 %v743, 126
        %v753 = vpop.permute.xlu0 %752
        %754 = vrot.lane.b32.xlu0 %v749, 126
        %v755 = vpop.permute.xlu0 %754
        %756 = vrot.lane.b32.xlu0 %v744, 126
        %v757 = vpop.permute.xlu0 %756
        %758 = vrot.lane.b32.xlu0 %v750, 126
        %v759 = vpop.permute.xlu0 %758
        %760 = vrot.lane.b32.xlu0 %v745, 126
        %v761 = vpop.permute.xlu0 %760
        %762 = vrot.lane.b32.xlu0 %v751, 126
        %v763 = vpop.permute.xlu0 %762
        %vm764 = vcmask 1031168
        %v765 = vsel %vm764, %v753, %v755
        %v766 = vsel %vm764, %v755, %v757
        %v767 = vsel %vm764, %v757, %v759
        %v768 = vsel %vm764, %v759, %v761
        %v769 = vsel %vm764, %v761, %v763
        %775 = vst [vmem:[#allocation2 + $0x118] sm:$0xf] %v765
        %776 = vst [vmem:[#allocation2 + $0x120] sm:$0xf] %v766
        %777 = vst [vmem:[#allocation2 + $0x128] sm:$0xf] %v767
        %778 = vst [vmem:[#allocation2 + $0x130] sm:$0xf] %v768
        %779 = vst [vmem:[#allocation2 + $0x138] sm:$0xf] %v769
        %v780 = vld [vmem:[%s239 + $0x4] sm:$0xff]
        %v781 = vld [vmem:[%s239 + $0xc] sm:$0xff]
        %v782 = vld [vmem:[%s239 + $0x14] sm:$0xff]
        %v786 = vcombine.low %v780, %v780
        %v787 = vcombine.low %v781, %v781
        %v788 = vcombine.low %v782, %v782
        %789 = vrot.lane.b32.xlu0 %v786, 86
        %v790 = vpop.permute.xlu0 %789
        %791 = vrot.lane.b32.xlu0 %v780, 86
        %v792 = vpop.permute.xlu0 %791
        %793 = vrot.lane.b32.xlu0 %v787, 86
        %v794 = vpop.permute.xlu0 %793
        %795 = vrot.lane.b32.xlu0 %v781, 86
        %v796 = vpop.permute.xlu0 %795
        %797 = vrot.lane.b32.xlu0 %v788, 86
        %v798 = vpop.permute.xlu0 %797
        %799 = vrot.lane.b32.xlu0 %v782, 86
        %v800 = vpop.permute.xlu0 %799
        %vm801 = vcmask 703488
        %v802 = vsel %vm801, %v790, %v792
        %v803 = vsel %vm801, %v792, %v794
        %v804 = vsel %vm801, %v794, %v796
        %v805 = vsel %vm801, %v796, %v798
        %v806 = vsel %vm801, %v798, %v800
        %812 = vst [vmem:[#allocation2 + $0x118] sm:$0xf0] %v802
        %813 = vst [vmem:[#allocation2 + $0x120] sm:$0xf0] %v803
        %814 = vst [vmem:[#allocation2 + $0x128] sm:$0xf0] %v804
        %815 = vst [vmem:[#allocation2 + $0x130] sm:$0xf0] %v805
        %816 = vst [vmem:[#allocation2 + $0x138] sm:$0xf0] %v806
        %v817 = vld [vmem:[%s239 + $0x4] sm:$0xff]
        %v818 = vld [vmem:[%s239 + $0xc] sm:$0xff]
        %v819 = vld [vmem:[%s239 + $0x14] sm:$0xff]
        %v823 = vcombine.high %v817, %v817
        %v824 = vcombine.high %v818, %v818
        %v825 = vcombine.high %v819, %v819
        %826 = vrot.lane.b32.xlu0 %v817, 84
        %v827 = vpop.permute.xlu0 %826
        %828 = vrot.lane.b32.xlu0 %v823, 84
        %v829 = vpop.permute.xlu0 %828
        %830 = vrot.lane.b32.xlu0 %v818, 84
        %v831 = vpop.permute.xlu0 %830
        %832 = vrot.lane.b32.xlu0 %v824, 84
        %v833 = vpop.permute.xlu0 %832
        %834 = vrot.lane.b32.xlu0 %v819, 84
        %v835 = vpop.permute.xlu0 %834
        %836 = vrot.lane.b32.xlu0 %v825, 84
        %v837 = vpop.permute.xlu0 %836
        %vm838 = vcmask 687104
        %v839 = vsel %vm838, %v827, %v829
        %v840 = vsel %vm838, %v829, %v831
        %v841 = vsel %vm838, %v831, %v833
        %v842 = vsel %vm838, %v833, %v835
        %v843 = vsel %vm838, %v835, %v837
        %849 = vst [vmem:[#allocation2 + $0x140] sm:$0xf] %v839
        %850 = vst [vmem:[#allocation2 + $0x148] sm:$0xf] %v840
        %851 = vst [vmem:[#allocation2 + $0x150] sm:$0xf] %v841
        %852 = vst [vmem:[#allocation2 + $0x158] sm:$0xf] %v842
        %853 = vst [vmem:[#allocation2 + $0x160] sm:$0xf] %v843
        %v854 = vld [vmem:[%s239 + $0x4] sm:$0xff]
        %v855 = vld [vmem:[%s239 + $0xc] sm:$0xff]
        %v856 = vld [vmem:[%s239 + $0x14] sm:$0xff]
        %v860 = vcombine.low %v854, %v854
        %v861 = vcombine.low %v855, %v855
        %v862 = vcombine.low %v856, %v856
        %863 = vrot.lane.b32.xlu0 %v860, 82
        %v864 = vpop.permute.xlu0 %863
        %865 = vrot.lane.b32.xlu0 %v854, 82
        %v866 = vpop.permute.xlu0 %865
        %867 = vrot.lane.b32.xlu0 %v861, 82
        %v868 = vpop.permute.xlu0 %867
        %869 = vrot.lane.b32.xlu0 %v855, 82
        %v870 = vpop.permute.xlu0 %869
        %871 = vrot.lane.b32.xlu0 %v862, 82
        %v872 = vpop.permute.xlu0 %871
        %873 = vrot.lane.b32.xlu0 %v856, 82
        %v874 = vpop.permute.xlu0 %873
        %vm875 = vcmask 670720
        %v876 = vsel %vm875, %v864, %v866
        %v877 = vsel %vm875, %v866, %v868
        %v878 = vsel %vm875, %v868, %v870
        %v879 = vsel %vm875, %v870, %v872
        %v880 = vsel %vm875, %v872, %v874
        %886 = vst [vmem:[#allocation2 + $0x140] sm:$0xf0] %v876
        %887 = vst [vmem:[#allocation2 + $0x148] sm:$0xf0] %v877
        %888 = vst [vmem:[#allocation2 + $0x150] sm:$0xf0] %v878
        %889 = vst [vmem:[#allocation2 + $0x158] sm:$0xf0] %v879
        %890 = vst [vmem:[#allocation2 + $0x160] sm:$0xf0] %v880
        %v891 = vld [vmem:[%s239] sm:$0xff]
        %v892 = vld [vmem:[%s239 + $0x8] sm:$0xff]
        %v893 = vld [vmem:[%s239 + $0x10] sm:$0xff]
        %v897 = vcombine.high %v891, %v891
        %v898 = vcombine.high %v892, %v892
        %v899 = vcombine.high %v893, %v893
        %900 = vrot.lane.b32.xlu0 %v891, 69
        %v901 = vpop.permute.xlu0 %900
        %902 = vrot.lane.b32.xlu0 %v897, 69
        %v903 = vpop.permute.xlu0 %902
        %904 = vrot.lane.b32.xlu0 %v892, 69
        %v905 = vpop.permute.xlu0 %904
        %906 = vrot.lane.b32.xlu0 %v898, 69
        %v907 = vpop.permute.xlu0 %906
        %908 = vrot.lane.b32.xlu0 %v893, 69
        %v909 = vpop.permute.xlu0 %908
        %910 = vrot.lane.b32.xlu0 %v899, 69
        %v911 = vpop.permute.xlu0 %910
        %vm912 = vcmask 564224
        %v913 = vsel %vm912, %v901, %v903
        %v914 = vsel %vm912, %v903, %v905
        %v915 = vsel %vm912, %v905, %v907
        %v916 = vsel %vm912, %v907, %v909
        %v917 = vsel %vm912, %v909, %v911
        %923 = vst [vmem:[#allocation2 + $0x168] sm:$0xf] %v913
        %924 = vst [vmem:[#allocation2 + $0x170] sm:$0xf] %v914
        %925 = vst [vmem:[#allocation2 + $0x178] sm:$0xf] %v915
        %926 = vst [vmem:[#allocation2 + $0x180] sm:$0xf] %v916
        %927 = vst [vmem:[#allocation2 + $0x188] sm:$0xf] %v917
        %v928 = vld [vmem:[%s239] sm:$0xff]
        %v929 = vld [vmem:[%s239 + $0x8] sm:$0xff]
        %v930 = vld [vmem:[%s239 + $0x10] sm:$0xff]
        %v934 = vcombine.low %v928, %v928
        %v935 = vcombine.low %v929, %v929
        %v936 = vcombine.low %v930, %v930
        %937 = vrot.lane.b32.xlu0 %v934, 66
        %v938 = vpop.permute.xlu0 %937
        %939 = vrot.lane.b32.xlu0 %v928, 66
        %v940 = vpop.permute.xlu0 %939
        %941 = vrot.lane.b32.xlu0 %v935, 66
        %v942 = vpop.permute.xlu0 %941
        %943 = vrot.lane.b32.xlu0 %v929, 66
        %v944 = vpop.permute.xlu0 %943
        %945 = vrot.lane.b32.xlu0 %v936, 66
        %v946 = vpop.permute.xlu0 %945
        %947 = vrot.lane.b32.xlu0 %v930, 66
        %v948 = vpop.permute.xlu0 %947
        %vm949 = vcmask 539648
        %v950 = vsel %vm949, %v938, %v940
        %v951 = vsel %vm949, %v940, %v942
        %v952 = vsel %vm949, %v942, %v944
        %v953 = vsel %vm949, %v944, %v946
        %v954 = vsel %vm949, %v946, %v948
        %960 = vst [vmem:[#allocation2 + $0x168] sm:$0xf0] %v950
        %961 = vst [vmem:[#allocation2 + $0x170] sm:$0xf0] %v951
        %962 = vst [vmem:[#allocation2 + $0x178] sm:$0xf0] %v952
        %963 = vst [vmem:[#allocation2 + $0x180] sm:$0xf0] %v953
        %964 = vst [vmem:[#allocation2 + $0x188] sm:$0xf0] %v954
        %v965 = vld [vmem:[%s239] sm:$0xff]
        %v966 = vld [vmem:[%s239 + $0x8] sm:$0xff]
        %v967 = vld [vmem:[%s239 + $0x10] sm:$0xff]
        %v971 = vcombine.high %v965, %v965
        %v972 = vcombine.high %v966, %v966
        %v973 = vcombine.high %v967, %v967
        %974 = vrot.lane.b32.xlu0 %v965, 63
        %v975 = vpop.permute.xlu0 %974
        %976 = vrot.lane.b32.xlu0 %v971, 63
        %v977 = vpop.permute.xlu0 %976
        %978 = vrot.lane.b32.xlu0 %v966, 63
        %v979 = vpop.permute.xlu0 %978
        %980 = vrot.lane.b32.xlu0 %v972, 63
        %v981 = vpop.permute.xlu0 %980
        %982 = vrot.lane.b32.xlu0 %v967, 63
        %v983 = vpop.permute.xlu0 %982
        %984 = vrot.lane.b32.xlu0 %v973, 63
        %v985 = vpop.permute.xlu0 %984
        %vm986 = vcmask 515072
        %v987 = vsel %vm986, %v975, %v977
        %v988 = vsel %vm986, %v977, %v979
        %v989 = vsel %vm986, %v979, %v981
        %v990 = vsel %vm986, %v981, %v983
        %v991 = vsel %vm986, %v983, %v985
        %997 = vst [vmem:[#allocation2 + $0x190] sm:$0xf] %v987
        %998 = vst [vmem:[#allocation2 + $0x198] sm:$0xf] %v988
        %999 = vst [vmem:[#allocation2 + $0x1a0] sm:$0xf] %v989
        %1000 = vst [vmem:[#allocation2 + $0x1a8] sm:$0xf] %v990
        %1001 = vst [vmem:[#allocation2 + $0x1b0] sm:$0xf] %v991
        %v1002 = vld [vmem:[%s239] sm:$0xff]
        %v1003 = vld [vmem:[%s239 + $0x8] sm:$0xff]
        %v1004 = vld [vmem:[%s239 + $0x10] sm:$0xff]
        %v1008 = vcombine.low %v1002, %v1002
        %v1009 = vcombine.low %v1003, %v1003
        %v1010 = vcombine.low %v1004, %v1004
        %1011 = vrot.lane.b32.xlu0 %v1008, 3
        %v1012 = vpop.permute.xlu0 %1011
        %1013 = vrot.lane.b32.xlu0 %v1002, 3
        %v1014 = vpop.permute.xlu0 %1013
        %1015 = vrot.lane.b32.xlu0 %v1009, 3
        %v1016 = vpop.permute.xlu0 %1015
        %1017 = vrot.lane.b32.xlu0 %v1003, 3
        %v1018 = vpop.permute.xlu0 %1017
        %1019 = vrot.lane.b32.xlu0 %v1010, 3
        %v1020 = vpop.permute.xlu0 %1019
        %1021 = vrot.lane.b32.xlu0 %v1004, 3
        %v1022 = vpop.permute.xlu0 %1021
        %vm1023 = vcmask 23552
        %v1024 = vsel %vm1023, %v1012, %v1014
        %v1025 = vsel %vm1023, %v1014, %v1016
        %v1026 = vsel %vm1023, %v1016, %v1018
        %v1027 = vsel %vm1023, %v1018, %v1020
        %v1028 = vsel %vm1023, %v1020, %v1022
        %1034 = vst [vmem:[#allocation2 + $0x190] sm:$0xf0] %v1024
        %1035 = vst [vmem:[#allocation2 + $0x198] sm:$0xf0] %v1025
        %1036 = vst [vmem:[#allocation2 + $0x1a0] sm:$0xf0] %v1026
        %1037 = vst [vmem:[#allocation2 + $0x1a8] sm:$0xf0] %v1027
        %1038 = vst [vmem:[#allocation2 + $0x1b0] sm:$0xf0] %v1028
        %v1039 = vld [vmem:[%s239 + $0x4] sm:$0xff]
        %v1040 = vld [vmem:[%s239 + $0xc] sm:$0xff]
        %v1041 = vld [vmem:[%s239 + $0x14] sm:$0xf]
        %v1044 = vcombine.high %v1039, %v1039
        %v1045 = vcombine.high %v1040, %v1040
        %1048 = vst [vmem:[#allocation2 + $0x1b8] sm:$0xf] %v1039
        %1049 = vst [vmem:[#allocation2 + $0x1c0] sm:$0xf] %v1044
        %1050 = vst [vmem:[#allocation2 + $0x1c8] sm:$0xf] %v1040
        %1051 = vst [vmem:[#allocation2 + $0x1d0] sm:$0xf] %v1045
        %1052 = vst [vmem:[#allocation2 + $0x1d8] sm:$0xf] %v1041
        %v1053 = vld [vmem:[%s239 + $0x4] sm:$0xff]
        %v1054 = vld [vmem:[%s239 + $0xc] sm:$0xff]
        %v1055 = vld [vmem:[%s239 + $0x14] sm:$0xff]
        %v1059 = vcombine.low %v1053, %v1053
        %v1060 = vcombine.low %v1054, %v1054
        %v1061 = vcombine.low %v1055, %v1055
        %1062 = vrot.lane.b32.xlu0 %v1059, 125
        %v1063 = vpop.permute.xlu0 %1062
        %1064 = vrot.lane.b32.xlu0 %v1053, 125
        %v1065 = vpop.permute.xlu0 %1064
        %1066 = vrot.lane.b32.xlu0 %v1060, 125
        %v1067 = vpop.permute.xlu0 %1066
        %1068 = vrot.lane.b32.xlu0 %v1054, 125
        %v1069 = vpop.permute.xlu0 %1068
        %1070 = vrot.lane.b32.xlu0 %v1061, 125
        %v1071 = vpop.permute.xlu0 %1070
        %1072 = vrot.lane.b32.xlu0 %v1055, 125
        %v1073 = vpop.permute.xlu0 %1072
        %vm1074 = vcmask 1022976
        %v1075 = vsel %vm1074, %v1063, %v1065
        %v1076 = vsel %vm1074, %v1065, %v1067
        %v1077 = vsel %vm1074, %v1067, %v1069
        %v1078 = vsel %vm1074, %v1069, %v1071
        %v1079 = vsel %vm1074, %v1071, %v1073
        %1085 = vst [vmem:[#allocation2 + $0x1b8] sm:$0xf0] %v1075
        %1086 = vst [vmem:[#allocation2 + $0x1c0] sm:$0xf0] %v1076
        %1087 = vst [vmem:[#allocation2 + $0x1c8] sm:$0xf0] %v1077
        %1088 = vst [vmem:[#allocation2 + $0x1d0] sm:$0xf0] %v1078
        %1089 = vst [vmem:[#allocation2 + $0x1d8] sm:$0xf0] %v1079
        %v1090 = vld [vmem:[%s239 + $0x4] sm:$0xff]
        %v1091 = vld [vmem:[%s239 + $0xc] sm:$0xff]
        %v1092 = vld [vmem:[%s239 + $0x14] sm:$0xff]
        %v1096 = vcombine.high %v1090, %v1090
        %v1097 = vcombine.high %v1091, %v1091
        %v1098 = vcombine.high %v1092, %v1092
        %1099 = vrot.lane.b32.xlu0 %v1090, 65
        %v1100 = vpop.permute.xlu0 %1099
        %1101 = vrot.lane.b32.xlu0 %v1096, 65
        %v1102 = vpop.permute.xlu0 %1101
        %1103 = vrot.lane.b32.xlu0 %v1091, 65
        %v1104 = vpop.permute.xlu0 %1103
        %1105 = vrot.lane.b32.xlu0 %v1097, 65
        %v1106 = vpop.permute.xlu0 %1105
        %1107 = vrot.lane.b32.xlu0 %v1092, 65
        %v1108 = vpop.permute.xlu0 %1107
        %1109 = vrot.lane.b32.xlu0 %v1098, 65
        %v1110 = vpop.permute.xlu0 %1109
        %vm1111 = vcmask 531456
        %v1112 = vsel %vm1111, %v1100, %v1102
        %v1113 = vsel %vm1111, %v1102, %v1104
        %v1114 = vsel %vm1111, %v1104, %v1106
        %v1115 = vsel %vm1111, %v1106, %v1108
        %v1116 = vsel %vm1111, %v1108, %v1110
        %1122 = vst [vmem:[#allocation2 + $0x1e0] sm:$0xf] %v1112
        %1123 = vst [vmem:[#allocation2 + $0x1e8] sm:$0xf] %v1113
        %1124 = vst [vmem:[#allocation2 + $0x1f0] sm:$0xf] %v1114
        %1125 = vst [vmem:[#allocation2 + $0x1f8] sm:$0xf] %v1115
        %1126 = vst [vmem:[#allocation2 + $0x200] sm:$0xf] %v1116
        %v1127 = vld [vmem:[%s239 + $0x4] sm:$0xff]
        %v1128 = vld [vmem:[%s239 + $0xc] sm:$0xff]
        %v1129 = vld [vmem:[%s239 + $0x14] sm:$0xff]
        %v1133 = vcombine.low %v1127, %v1127
        %v1134 = vcombine.low %v1128, %v1128
        %v1135 = vcombine.low %v1129, %v1129
        %1136 = vrot.lane.b32.xlu0 %v1133, 62
        %v1137 = vpop.permute.xlu0 %1136
        %1138 = vrot.lane.b32.xlu0 %v1127, 62
        %v1139 = vpop.permute.xlu0 %1138
        %1140 = vrot.lane.b32.xlu0 %v1134, 62
        %v1141 = vpop.permute.xlu0 %1140
        %1142 = vrot.lane.b32.xlu0 %v1128, 62
        %v1143 = vpop.permute.xlu0 %1142
        %1144 = vrot.lane.b32.xlu0 %v1135, 62
        %v1145 = vpop.permute.xlu0 %1144
        %1146 = vrot.lane.b32.xlu0 %v1129, 62
        %v1147 = vpop.permute.xlu0 %1146
        %vm1148 = vcmask 506880
        %v1149 = vsel %vm1148, %v1137, %v1139
        %v1150 = vsel %vm1148, %v1139, %v1141
        %v1151 = vsel %vm1148, %v1141, %v1143
        %v1152 = vsel %vm1148, %v1143, %v1145
        %v1153 = vsel %vm1148, %v1145, %v1147
        %1159 = vst [vmem:[#allocation2 + $0x1e0] sm:$0xf0] %v1149
        %1160 = vst [vmem:[#allocation2 + $0x1e8] sm:$0xf0] %v1150
        %1161 = vst [vmem:[#allocation2 + $0x1f0] sm:$0xf0] %v1151
        %1162 = vst [vmem:[#allocation2 + $0x1f8] sm:$0xf0] %v1152
        %1163 = vst [vmem:[#allocation2 + $0x200] sm:$0xf0] %v1153
        %v1164 = vld [vmem:[%s239 + $0x4] sm:$0xff]
        %v1165 = vld [vmem:[%s239 + $0xc] sm:$0xff]
        %v1166 = vld [vmem:[%s239 + $0x14] sm:$0xff]
        %v1170 = vcombine.high %v1164, %v1164
        %v1171 = vcombine.high %v1165, %v1165
        %v1172 = vcombine.high %v1166, %v1166
        %1173 = vrot.lane.b32.xlu0 %v1164, 59
        %v1174 = vpop.permute.xlu0 %1173
        %1175 = vrot.lane.b32.xlu0 %v1170, 59
        %v1176 = vpop.permute.xlu0 %1175
        %1177 = vrot.lane.b32.xlu0 %v1165, 59
        %v1178 = vpop.permute.xlu0 %1177
        %1179 = vrot.lane.b32.xlu0 %v1171, 59
        %v1180 = vpop.permute.xlu0 %1179
        %1181 = vrot.lane.b32.xlu0 %v1166, 59
        %v1182 = vpop.permute.xlu0 %1181
        %1183 = vrot.lane.b32.xlu0 %v1172, 59
        %v1184 = vpop.permute.xlu0 %1183
        %vm1185 = vcmask 482304
        %v1186 = vsel %vm1185, %v1174, %v1176
        %v1187 = vsel %vm1185, %v1176, %v1178
        %v1188 = vsel %vm1185, %v1178, %v1180
        %v1189 = vsel %vm1185, %v1180, %v1182
        %v1190 = vsel %vm1185, %v1182, %v1184
        %1196 = vst [vmem:[#allocation2 + $0x208] sm:$0xf] %v1186
        %1197 = vst [vmem:[#allocation2 + $0x210] sm:$0xf] %v1187
        %1198 = vst [vmem:[#allocation2 + $0x218] sm:$0xf] %v1188
        %1199 = vst [vmem:[#allocation2 + $0x220] sm:$0xf] %v1189
        %1200 = vst [vmem:[#allocation2 + $0x228] sm:$0xf] %v1190
        %v1201 = vld [vmem:[%s2] sm:$0xff]
        %v1202 = vld [vmem:[%s2 + $0x8] sm:$0xf]
        %v1203 = vld [vmem:[#allocation2] sm:$0xff]
        %v1204 = vld [vmem:[#allocation2 + $0x8] sm:$0xff]
        %v1205 = vld [vmem:[#allocation2 + $0x10] sm:$0xff]
        %v1206 = vld [vmem:[#allocation2 + $0x18] sm:$0xff]
        %v1207 = vld [vmem:[#allocation2 + $0x20] sm:$0xff]
        %v1208 = vld [vmem:[#allocation2 + $0x28] sm:$0xff]
        %v1209 = vld [vmem:[#allocation2 + $0x30] sm:$0xff]
        %v1210 = vld [vmem:[#allocation2 + $0x38] sm:$0xff]
        %v1211 = vld [vmem:[#allocation2 + $0x40] sm:$0xff]
        %v1212 = vld [vmem:[#allocation2 + $0x48] sm:$0xff]
        %v1213 = vld [vmem:[#allocation2 + $0x50] sm:$0xff]
        %v1214 = vld [vmem:[#allocation2 + $0x58] sm:$0xff]
        %v1215 = vld [vmem:[#allocation2 + $0x60] sm:$0xff]
        %v1216 = vld [vmem:[#allocation2 + $0x68] sm:$0xff]
        %v1217 = vld [vmem:[#allocation2 + $0x70] sm:$0xff]
        %v1218 = vld [vmem:[#allocation2 + $0x78] sm:$0xff]
        %v1219 = vld [vmem:[#allocation2 + $0x80] sm:$0xff]
        %v1220 = vld [vmem:[#allocation2 + $0x88] sm:$0xff]
        %v1221 = vld [vmem:[#allocation2 + $0x90] sm:$0xff]
        %v1222 = vld [vmem:[#allocation2 + $0x98] sm:$0xff]
        %v1223 = vld [vmem:[#allocation2 + $0xa0] sm:$0xff]
        %v1224 = vld [vmem:[#allocation2 + $0xa8] sm:$0xff]
        %v1225 = vld [vmem:[#allocation2 + $0xb0] sm:$0xff]
        %v1226 = vld [vmem:[#allocation2 + $0xb8] sm:$0xff]
        %v1227 = vld [vmem:[#allocation2 + $0xc0] sm:$0xff]
        %v1228 = vld [vmem:[#allocation2 + $0xc8] sm:$0xff]
        %v1229 = vld [vmem:[#allocation2 + $0xd0] sm:$0xff]
        %v1230 = vld [vmem:[#allocation2 + $0xd8] sm:$0xff]
        %v1231 = vld [vmem:[#allocation2 + $0xe0] sm:$0xff]
        %v1232 = vld [vmem:[#allocation2 + $0xe8] sm:$0xff]
        %v1233 = vld [vmem:[#allocation2 + $0xf0] sm:$0xff]
        %v1234 = vld [vmem:[#allocation2 + $0xf8] sm:$0xff]
        %v1235 = vld [vmem:[#allocation2 + $0x100] sm:$0xff]
        %v1236 = vld [vmem:[#allocation2 + $0x108] sm:$0xff]
        %v1237 = vld [vmem:[#allocation2 + $0x110] sm:$0xff]
        %v1238 = vld [vmem:[#allocation2 + $0x118] sm:$0xff]
        %v1239 = vld [vmem:[#allocation2 + $0x120] sm:$0xff]
        %v1240 = vld [vmem:[#allocation2 + $0x128] sm:$0xff]
        %v1241 = vld [vmem:[#allocation2 + $0x130] sm:$0xff]
        %v1242 = vld [vmem:[#allocation2 + $0x138] sm:$0xff]
        %v1243 = vld [vmem:[#allocation2 + $0x140] sm:$0xff]
        %v1244 = vld [vmem:[#allocation2 + $0x148] sm:$0xff]
        %v1245 = vld [vmem:[#allocation2 + $0x150] sm:$0xff]
        %v1246 = vld [vmem:[#allocation2 + $0x158] sm:$0xff]
        %v1247 = vld [vmem:[#allocation2 + $0x160] sm:$0xff]
        %v1248 = vld [vmem:[#allocation2 + $0x168] sm:$0xff]
        %v1249 = vld [vmem:[#allocation2 + $0x170] sm:$0xff]
        %v1250 = vld [vmem:[#allocation2 + $0x178] sm:$0xff]
        %v1251 = vld [vmem:[#allocation2 + $0x180] sm:$0xff]
        %v1252 = vld [vmem:[#allocation2 + $0x188] sm:$0xff]
        %v1253 = vld [vmem:[#allocation2 + $0x190] sm:$0xff]
        %v1254 = vld [vmem:[#allocation2 + $0x198] sm:$0xff]
        %v1255 = vld [vmem:[#allocation2 + $0x1a0] sm:$0xff]
        %v1256 = vld [vmem:[#allocation2 + $0x1a8] sm:$0xff]
        %v1257 = vld [vmem:[#allocation2 + $0x1b0] sm:$0xff]
        %v1258 = vld [vmem:[#allocation2 + $0x1b8] sm:$0xff]
        %v1259 = vld [vmem:[#allocation2 + $0x1c0] sm:$0xff]
        %v1260 = vld [vmem:[#allocation2 + $0x1c8] sm:$0xff]
        %v1261 = vld [vmem:[#allocation2 + $0x1d0] sm:$0xff]
        %v1262 = vld [vmem:[#allocation2 + $0x1d8] sm:$0xff]
        %v1263 = vld [vmem:[#allocation2 + $0x1e0] sm:$0xff]
        %v1264 = vld [vmem:[#allocation2 + $0x1e8] sm:$0xff]
        %v1265 = vld [vmem:[#allocation2 + $0x1f0] sm:$0xff]
        %v1266 = vld [vmem:[#allocation2 + $0x1f8] sm:$0xff]
        %v1267 = vld [vmem:[#allocation2 + $0x200] sm:$0xff]
        %v1268 = vld [vmem:[#allocation2 + $0x208] sm:$0xf]
        %v1269 = vld [vmem:[#allocation2 + $0x210] sm:$0xf]
        %v1270 = vld [vmem:[#allocation2 + $0x218] sm:$0xf]
        %v1271 = vld [vmem:[#allocation2 + $0x220] sm:$0xf]
        %v1272 = vld [vmem:[#allocation2 + $0x228] sm:$0xf]
        %v1273 = vld [vmem:[%s3] sm:$0xff]
        %v1274 = vld [vmem:[%s3 + $0x8] sm:$0xf]
        %1276 = vset.pattern.permute.xlu0 0
        %1277 = vperm.xlu0 %1276, %v1273
        %v1278 = vpop.permute.xlu0 %1277
        %1281 = vset.pattern.permute.xlu0 0
        %1282 = vperm.xlu0 %1281, %v1274
        %v1283 = vpop.permute.xlu0 %1282
        %vm1285 = vcmask 883712
        %v1287 = vsel %vm1285, %v1201, 0
        %v1290 = vsel %vm1285, %v1202, 0
        %vm1292 = vcmask 1043456
        %v1294 = vsel %vm1292, %v1268, 0
        %v1297 = vsel %vm1292, %v1269, 0
        %v1300 = vsel %vm1292, %v1270, 0
        %v1303 = vsel %vm1292, %v1271, 0
        %v1306 = vsel %vm1292, %v1272, 0
        %1308 = vmatprep.subr.mxu0 %v1204
        %1309 = vmatpush1.msra.mxu0 %v1203
        %1310 = vmatprep.subr.mxu0 %v1209
        %1311 = vmatpush1.msra.mxu0 %v1208
        %1312 = vmatprep.subr.mxu0 %v1214
        %1313 = vmatpush1.msra.mxu0 %v1213
        %1314 = vmatprep.subr.mxu0 %v1219
        %1315 = vmatpush1.msra.mxu0 %v1218
        %1316 = vmatprep.subr.mxu0 %v1224
        %1317 = vmatpush1.msra.mxu0 %v1223
        %1318 = vmatprep.subr.mxu0 %v1229
        %1319 = vmatpush1.msra.mxu0 %v1228
        %1320 = vmatprep.subr.mxu0 %v1234
        %1321 = vmatpush1.msra.mxu0 %v1233
        %1322 = vmatprep.subr.mxu0 %v1239
        %1323 = vmatpush1.msra.mxu0 %v1238
        %1324 = vmatprep.subr.mxu0 %v1244
        %1325 = vmatpush1.msra.mxu0 %v1243
        %1326 = vmatprep.subr.mxu0 %v1249
        %1327 = vmatpush1.msra.mxu0 %v1248
        %1328 = vmatprep.subr.mxu0 %v1254
        %1329 = vmatpush1.msra.mxu0 %v1253
        %1330 = vmatprep.subr.mxu0 %v1259
        %1331 = vmatpush1.msra.mxu0 %v1258
        %1332 = vmatprep.subr.mxu0 %v1264
        %1333 = vmatpush1.msra.mxu0 %v1263
        %1334 = vmatprep.subr.mxu0 %v1297
        %1335 = vmatpush1.msra.mxu0 %v1294
        %1336 = vmatprep.subr.mxu0 0.0
        %1337 = vmatpush1.msra.mxu0 0.0
        %1338 = vmatprep.subr.mxu0 0.0
        %1339 = vmatpush1.msra.mxu0 0.0
        %1340 = vmatprep.subr.mxu0 0.0
        %1341 = vmatpush1.msra.mxu0 0.0
        %1342 = vmatprep.subr.mxu0 0.0
        %1343 = vmatpush1.msra.mxu0 0.0
        %1344 = vmatprep.subr.mxu0 0.0
        %1345 = vmatpush1.msra.mxu0 0.0
        %1346 = vmatprep.subr.mxu0 0.0
        %1347 = vmatpush1.msra.mxu0 0.0
        %1348 = vmatprep.subr.mxu0 0.0
        %1349 = vmatpush1.msra.mxu0 0.0
        %1350 = vmatprep.subr.mxu0 0.0
        %1351 = vmatpush1.msra.mxu0 0.0
        %1352 = vmatprep.subr.mxu0 0.0
        %1353 = vmatpush1.msra.mxu0 0.0
        %1354 = vmatprep.subr.mxu0 0.0
        %1355 = vmatpush1.msra.mxu0 0.0
        %1356 = vmatprep.subr.mxu0 0.0
        %1357 = vmatpush1.msra.mxu0 0.0
        %1358 = vmatprep.subr.mxu0 0.0
        %1359 = vmatpush1.msra.mxu0 0.0
        %1360 = vmatprep.subr.mxu0 0.0
        %1361 = vmatpush1.msra.mxu0 0.0
        %1362 = vmatprep.subr.mxu0 0.0
        %1363 = vmatpush1.msra.mxu0 0.0
        %1364 = vmatprep.subr.mxu0 0.0
        %1365 = vmatpush1.msra.mxu0 0.0
        %1366 = vmatprep.subr.mxu0 0.0
        %1367 = vmatpush1.msra.mxu0 0.0
        %1368 = vmatprep.subr.mxu0 0.0
        %1369 = vmatpush1.msra.mxu0 0.0
        %1370 = vmatprep.subr.mxu0 0.0
        %1371 = vmatpush1.msra.mxu0 0.0
        %1372 = vmatprep.mubr.f32.mxu0 0.0
        %1373 = vmatmul.mubr.f32.gmra.mrb[0].mxu0 %v1287
        %v1374 = vpop.f32.mrb[0].mxu0
        %v1375 = vadd.f32 %v1278, %v1374
        %v1376 = vpop.f32.mrb[0].mxu0
        %v1377 = vadd.f32 %v1278, %v1376
        %1378 = vmatprep.mubr.f32.mxu0 0.0
        %1379 = vmatmul.mubr.f32.gmra.mrb[0].mxu0 %v1290
        %v1380 = vpop.f32.mrb[0].mxu0
        %v1381 = vadd.f32 %v1283, %v1380
        %v1382 = vpop.f32.mrb[0].mxu0
        %v1383 = vadd.f32 %v1283, %v1382
        %1384 = vdwg.mxu0
        %1385 = vmatprep.subr.mxu0 %v1206
        %1386 = vmatpush1.msra.mxu0 %v1205
        %1387 = vmatprep.subr.mxu0 %v1211
        %1388 = vmatpush1.msra.mxu0 %v1210
        %1389 = vmatprep.subr.mxu0 %v1216
        %1390 = vmatpush1.msra.mxu0 %v1215
        %1391 = vmatprep.subr.mxu0 %v1221
        %1392 = vmatpush1.msra.mxu0 %v1220
        %1393 = vmatprep.subr.mxu0 %v1226
        %1394 = vmatpush1.msra.mxu0 %v1225
        %1395 = vmatprep.subr.mxu0 %v1231
        %1396 = vmatpush1.msra.mxu0 %v1230
        %1397 = vmatprep.subr.mxu0 %v1236
        %1398 = vmatpush1.msra.mxu0 %v1235
        %1399 = vmatprep.subr.mxu0 %v1241
        %1400 = vmatpush1.msra.mxu0 %v1240
        %1401 = vmatprep.subr.mxu0 %v1246
        %1402 = vmatpush1.msra.mxu0 %v1245
        %1403 = vmatprep.subr.mxu0 %v1251
        %1404 = vmatpush1.msra.mxu0 %v1250
        %1405 = vmatprep.subr.mxu0 %v1256
        %1406 = vmatpush1.msra.mxu0 %v1255
        %1407 = vmatprep.subr.mxu0 %v1261
        %1408 = vmatpush1.msra.mxu0 %v1260
        %1409 = vmatprep.subr.mxu0 %v1266
        %1410 = vmatpush1.msra.mxu0 %v1265
        %1411 = vmatprep.subr.mxu0 %v1303
        %1412 = vmatpush1.msra.mxu0 %v1300
        %1413 = vmatprep.subr.mxu0 0.0
        %1414 = vmatpush1.msra.mxu0 0.0
        %1415 = vmatprep.subr.mxu0 0.0
        %1416 = vmatpush1.msra.mxu0 0.0
        %1417 = vmatprep.subr.mxu0 0.0
        %1418 = vmatpush1.msra.mxu0 0.0
        %1419 = vmatprep.subr.mxu0 0.0
        %1420 = vmatpush1.msra.mxu0 0.0
        %1421 = vmatprep.subr.mxu0 0.0
        %1422 = vmatpush1.msra.mxu0 0.0
        %1423 = vmatprep.subr.mxu0 0.0
        %1424 = vmatpush1.msra.mxu0 0.0
        %1425 = vmatprep.subr.mxu0 0.0
        %1426 = vmatpush1.msra.mxu0 0.0
        %1427 = vmatprep.subr.mxu0 0.0
        %1428 = vmatpush1.msra.mxu0 0.0
        %1429 = vmatprep.subr.mxu0 0.0
        %1430 = vmatpush1.msra.mxu0 0.0
        %1431 = vmatprep.subr.mxu0 0.0
        %1432 = vmatpush1.msra.mxu0 0.0
        %1433 = vmatprep.subr.mxu0 0.0
        %1434 = vmatpush1.msra.mxu0 0.0
        %1435 = vmatprep.subr.mxu0 0.0
        %1436 = vmatpush1.msra.mxu0 0.0
        %1437 = vmatprep.subr.mxu0 0.0
        %1438 = vmatpush1.msra.mxu0 0.0
        %1439 = vmatprep.subr.mxu0 0.0
        %1440 = vmatpush1.msra.mxu0 0.0
        %1441 = vmatprep.subr.mxu0 0.0
        %1442 = vmatpush1.msra.mxu0 0.0
        %1443 = vmatprep.subr.mxu0 0.0
        %1444 = vmatpush1.msra.mxu0 0.0
        %1445 = vmatprep.subr.mxu0 0.0
        %1446 = vmatpush1.msra.mxu0 0.0
        %1447 = vmatprep.subr.mxu0 0.0
        %1448 = vmatpush1.msra.mxu0 0.0
        %1449 = vmatprep.mubr.f32.mxu0 0.0
        %1450 = vmatmul.mubr.f32.gmra.mrb[0].mxu0 %v1287
        %v1451 = vpop.f32.mrb[0].mxu0
        %v1452 = vadd.f32 %v1278, %v1451
        %v1453 = vpop.f32.mrb[0].mxu0
        %v1454 = vadd.f32 %v1278, %v1453
        %1455 = vmatprep.mubr.f32.mxu0 0.0
        %1456 = vmatmul.mubr.f32.gmra.mrb[0].mxu0 %v1290
        %v1457 = vpop.f32.mrb[0].mxu0
        %v1458 = vadd.f32 %v1283, %v1457
        %v1459 = vpop.f32.mrb[0].mxu0
        %v1460 = vadd.f32 %v1283, %v1459
        %1461 = vdwg.mxu0
        %1462 = vmatprep.subr.mxu0 0.0
        %1463 = vmatpush1.msra.mxu0 %v1207
        %1464 = vmatprep.subr.mxu0 0.0
        %1465 = vmatpush1.msra.mxu0 %v1212
        %1466 = vmatprep.subr.mxu0 0.0
        %1467 = vmatpush1.msra.mxu0 %v1217
        %1468 = vmatprep.subr.mxu0 0.0
        %1469 = vmatpush1.msra.mxu0 %v1222
        %1470 = vmatprep.subr.mxu0 0.0
        %1471 = vmatpush1.msra.mxu0 %v1227
        %1472 = vmatprep.subr.mxu0 0.0
        %1473 = vmatpush1.msra.mxu0 %v1232
        %1474 = vmatprep.subr.mxu0 0.0
        %1475 = vmatpush1.msra.mxu0 %v1237
        %1476 = vmatprep.subr.mxu0 0.0
        %1477 = vmatpush1.msra.mxu0 %v1242
        %1478 = vmatprep.subr.mxu0 0.0
        %1479 = vmatpush1.msra.mxu0 %v1247
        %1480 = vmatprep.subr.mxu0 0.0
        %1481 = vmatpush1.msra.mxu0 %v1252
        %1482 = vmatprep.subr.mxu0 0.0
        %1483 = vmatpush1.msra.mxu0 %v1257
        %1484 = vmatprep.subr.mxu0 0.0
        %1485 = vmatpush1.msra.mxu0 %v1262
        %1486 = vmatprep.subr.mxu0 0.0
        %1487 = vmatpush1.msra.mxu0 %v1267
        %1488 = vmatprep.subr.mxu0 0.0
        %1489 = vmatpush1.msra.mxu0 %v1306
        %1490 = vmatprep.subr.mxu0 0.0
        %1491 = vmatpush1.msra.mxu0 0.0
        %1492 = vmatprep.subr.mxu0 0.0
        %1493 = vmatpush1.msra.mxu0 0.0
        %1494 = vmatprep.subr.mxu0 0.0
        %1495 = vmatpush1.msra.mxu0 0.0
        %1496 = vmatprep.subr.mxu0 0.0
        %1497 = vmatpush1.msra.mxu0 0.0
        %1498 = vmatprep.subr.mxu0 0.0
        %1499 = vmatpush1.msra.mxu0 0.0
        %1500 = vmatprep.subr.mxu0 0.0
        %1501 = vmatpush1.msra.mxu0 0.0
        %1502 = vmatprep.subr.mxu0 0.0
        %1503 = vmatpush1.msra.mxu0 0.0
        %1504 = vmatprep.subr.mxu0 0.0
        %1505 = vmatpush1.msra.mxu0 0.0
        %1506 = vmatprep.subr.mxu0 0.0
        %1507 = vmatpush1.msra.mxu0 0.0
        %1508 = vmatprep.subr.mxu0 0.0
        %1509 = vmatpush1.msra.mxu0 0.0
        %1510 = vmatprep.subr.mxu0 0.0
        %1511 = vmatpush1.msra.mxu0 0.0
        %1512 = vmatprep.subr.mxu0 0.0
        %1513 = vmatpush1.msra.mxu0 0.0
        %1514 = vmatprep.subr.mxu0 0.0
        %1515 = vmatpush1.msra.mxu0 0.0
        %1516 = vmatprep.subr.mxu0 0.0
        %1517 = vmatpush1.msra.mxu0 0.0
        %1518 = vmatprep.subr.mxu0 0.0
        %1519 = vmatpush1.msra.mxu0 0.0
        %1520 = vmatprep.subr.mxu0 0.0
        %1521 = vmatpush1.msra.mxu0 0.0
        %1522 = vmatprep.subr.mxu0 0.0
        %1523 = vmatpush1.msra.mxu0 0.0
        %1524 = vmatprep.subr.mxu0 0.0
        %1525 = vmatpush1.msra.mxu0 0.0
        %1526 = vmatprep.mubr.f32.mxu0 0.0
        %1527 = vmatmul.mubr.f32.gmra.mrb[0].mxu0 %v1287
        %v1528 = vpop.f32.mrb[0].mxu0
        %v1529 = vadd.f32 %v1278, %v1528
        %v1530 = vpop.f32.mrb[0].mxu0
        %1531 = vmatprep.mubr.f32.mxu0 0.0
        %1532 = vmatmul.mubr.f32.gmra.mrb[0].mxu0 %v1290
        %v1533 = vpop.f32.mrb[0].mxu0
        %v1534 = vadd.f32 %v1283, %v1533
        %v1535 = vpop.f32.mrb[0].mxu0
        %1536 = vdwg.mxu0
        %v1537 = vmul.f32 %v1375, %v1375
        %v1538 = vmul.f32 %v1377, %v1377
        %v1539 = vmul.f32 %v1452, %v1452
        %v1540 = vmul.f32 %v1454, %v1454
        %v1541 = vmul.f32 %v1529, %v1529
        %v1542 = vmul.f32 %v1381, %v1381
        %v1543 = vmul.f32 %v1383, %v1383
        %v1544 = vmul.f32 %v1458, %v1458
        %v1545 = vmul.f32 %v1460, %v1460
        %v1546 = vmul.f32 %v1534, %v1534
        %v1547 = vmul.f32 %v1375, %v1537
        %v1548 = vmul.f32 %v1377, %v1538
        %v1549 = vmul.f32 %v1452, %v1539
        %v1550 = vmul.f32 %v1454, %v1540
        %v1551 = vmul.f32 %v1529, %v1541
        %v1552 = vmul.f32 %v1381, %v1542
        %v1553 = vmul.f32 %v1383, %v1543
        %v1554 = vmul.f32 %v1458, %v1544
        %v1555 = vmul.f32 %v1460, %v1545
        %v1556 = vmul.f32 %v1534, %v1546
        %v1557 = vmul.f32 %v1547, 0.044715
        %v1558 = vmul.f32 %v1548, 0.044715
        %v1559 = vmul.f32 %v1549, 0.044715
        %v1560 = vmul.f32 %v1550, 0.044715
        %v1561 = vmul.f32 %v1551, 0.044715
        %v1562 = vmul.f32 %v1552, 0.044715
        %v1563 = vmul.f32 %v1553, 0.044715
        %v1564 = vmul.f32 %v1554, 0.044715
        %v1565 = vmul.f32 %v1555, 0.044715
        %v1566 = vmul.f32 %v1556, 0.044715
        %v1567 = vadd.f32 %v1375, %v1557
        %v1568 = vadd.f32 %v1377, %v1558
        %v1569 = vadd.f32 %v1452, %v1559
        %v1570 = vadd.f32 %v1454, %v1560
        %v1571 = vadd.f32 %v1529, %v1561
        %v1572 = vadd.f32 %v1381, %v1562
        %v1573 = vadd.f32 %v1383, %v1563
        %v1574 = vadd.f32 %v1458, %v1564
        %v1575 = vadd.f32 %v1460, %v1565
        %v1576 = vadd.f32 %v1534, %v1566
        %v1577 = vmul.f32 %v1567, 0.7978846
        %v1578 = vmul.f32 %v1568, 0.7978846
        %v1579 = vmul.f32 %v1569, 0.7978846
        %v1580 = vmul.f32 %v1570, 0.7978846
        %v1581 = vmul.f32 %v1571, 0.7978846
        %v1582 = vmul.f32 %v1572, 0.7978846
        %v1583 = vmul.f32 %v1573, 0.7978846
        %v1584 = vmul.f32 %v1574, 0.7978846
        %v1585 = vmul.f32 %v1575, 0.7978846
        %v1586 = vmul.f32 %v1576, 0.7978846
        %v1587 = vtanh.pop %v1577
        %v1588 = vtanh.pop %v1578
        %v1589 = vtanh.pop %v1579
        %v1590 = vtanh.pop %v1580
        %v1591 = vtanh.pop %v1581
        %v1592 = vtanh.pop %v1582
        %v1593 = vtanh.pop %v1583
        %v1594 = vtanh.pop %v1584
        %v1595 = vtanh.pop %v1585
        %v1596 = vtanh.pop %v1586
        %v1597 = vadd.f32 %v1587, 1.0
        %v1598 = vadd.f32 %v1588, 1.0
        %v1599 = vadd.f32 %v1589, 1.0
        %v1600 = vadd.f32 %v1590, 1.0
        %v1601 = vadd.f32 %v1591, 1.0
        %v1602 = vadd.f32 %v1592, 1.0
        %v1603 = vadd.f32 %v1593, 1.0
        %v1604 = vadd.f32 %v1594, 1.0
        %v1605 = vadd.f32 %v1595, 1.0
        %v1606 = vadd.f32 %v1596, 1.0
        %v1607 = vmul.f32 %v1597, 0.5
        %v1608 = vmul.f32 %v1598, 0.5
        %v1609 = vmul.f32 %v1599, 0.5
        %v1610 = vmul.f32 %v1600, 0.5
        %v1611 = vmul.f32 %v1601, 0.5
        %v1612 = vmul.f32 %v1602, 0.5
        %v1613 = vmul.f32 %v1603, 0.5
        %v1614 = vmul.f32 %v1604, 0.5
        %v1615 = vmul.f32 %v1605, 0.5
        %v1616 = vmul.f32 %v1606, 0.5
        %v1617 = vmul.f32 %v1375, %v1607
        %v1618 = vmul.f32 %v1377, %v1608
        %v1619 = vmul.f32 %v1452, %v1609
        %v1620 = vmul.f32 %v1454, %v1610
        %v1621 = vmul.f32 %v1529, %v1611
        %v1622 = vmul.f32 %v1381, %v1612
        %v1623 = vmul.f32 %v1383, %v1613
        %v1624 = vmul.f32 %v1458, %v1614
        %v1625 = vmul.f32 %v1460, %v1615
        %v1626 = vmul.f32 %v1534, %v1616
        %v1632 = vrot.slane %v1617, 4
        %v1633 = vrot.slane %v1618, 4
        %v1634 = vrot.slane %v1619, 4
        %v1635 = vrot.slane %v1620, 4
        %v1636 = vrot.slane %v1621, 4
        %v1642 = vadd.f32 %v1617, %v1632
        %v1643 = vadd.f32 %v1618, %v1633
        %v1644 = vadd.f32 %v1619, %v1634
        %v1645 = vadd.f32 %v1620, %v1635
        %v1646 = vadd.f32 %v1621, %v1636
        %v1647 = vadd.f32 %v1642, %v1622
        %v1648 = vadd.f32 %v1643, %v1623
        %v1649 = vadd.f32 %v1644, %v1624
        %v1650 = vadd.f32 %v1645, %v1625
        %v1651 = vadd.f32 %v1646, %v1626
        %v1652 = vld [vmem:[%s1] sm:$0x1f]
        %v1654 = vlaneseq
        %v1655 = vshrl.u32 %v1654, 7
        %v1656 = vsub.s32 0, %v1655
        %v1657 = vrot.slane %v1652, %v1656
        %v1658 = vlaneseq
        %v1659 = vshrl.u32 %v1658, 7
        %v1660 = vsub.s32 1, %v1659
        %v1661 = vrot.slane %v1652, %v1660
        %v1662 = vlaneseq
        %v1663 = vshrl.u32 %v1662, 7
        %v1664 = vsub.s32 2, %v1663
        %v1665 = vrot.slane %v1652, %v1664
        %v1666 = vlaneseq
        %v1667 = vshrl.u32 %v1666, 7
        %v1668 = vsub.s32 3, %v1667
        %v1669 = vrot.slane %v1652, %v1668
        %v1670 = vlaneseq
        %v1671 = vshrl.u32 %v1670, 7
        %v1672 = vsub.s32 4, %v1671
        %v1673 = vrot.slane %v1652, %v1672
        %v1679 = vmul.f32 %v1647, %v1657
        %v1680 = vmul.f32 %v1648, %v1661
        %v1681 = vmul.f32 %v1649, %v1665
        %v1682 = vmul.f32 %v1650, %v1669
        %v1683 = vmul.f32 %v1651, %v1673
        %1684 = vst [vmem:[#allocation3] sm:$0xf] 0.0
        %1685 = vst [vmem:[#allocation3 + $0x18] sm:$0xf] 0.0
        %v1690 = vcombine.low %v1679, %v1680
        %v1691 = vcombine.low %v1681, %v1682
        %1694 = vst [vmem:[#allocation3 + $0x4] sm:$0xff] %v1690
        %1695 = vst [vmem:[#allocation3 + $0xc] sm:$0xff] %v1691
        %1696 = vst [vmem:[#allocation3 + $0x14] sm:$0xf] %v1683
        %v1697 = vld [vmem:[#allocation3] sm:$0xff]
        %v1698 = vld [vmem:[#allocation3 + $0x8] sm:$0xff]
        %v1699 = vld [vmem:[#allocation3 + $0x10] sm:$0xff]
        %v1703 = vcombine.high %v1697, %v1697
        %v1704 = vcombine.high %v1698, %v1698
        %v1705 = vcombine.high %v1699, %v1699
        %1706 = vrot.lane.b32.xlu0 %v1697, 23
        %v1707 = vpop.permute.xlu0 %1706
        %1708 = vrot.lane.b32.xlu0 %v1703, 23
        %v1709 = vpop.permute.xlu0 %1708
        %1710 = vrot.lane.b32.xlu0 %v1698, 23
        %v1711 = vpop.permute.xlu0 %1710
        %1712 = vrot.lane.b32.xlu0 %v1704, 23
        %v1713 = vpop.permute.xlu0 %1712
        %1714 = vrot.lane.b32.xlu0 %v1699, 23
        %v1715 = vpop.permute.xlu0 %1714
        %1716 = vrot.lane.b32.xlu0 %v1705, 23
        %v1717 = vpop.permute.xlu0 %1716
        %v1718 = vsel %vm289, %v1707, %v1709
        %v1719 = vsel %vm289, %v1709, %v1711
        %v1720 = vsel %vm289, %v1711, %v1713
        %v1721 = vsel %vm289, %v1713, %v1715
        %v1722 = vsel %vm289, %v1715, %v1717
        %1728 = vst [vmem:[#allocation4] sm:$0xf] %v1718
        %1729 = vst [vmem:[#allocation4 + $0x8] sm:$0xf] %v1719
        %1730 = vst [vmem:[#allocation4 + $0x10] sm:$0xf] %v1720
        %1731 = vst [vmem:[#allocation4 + $0x18] sm:$0xf] %v1721
        %1732 = vst [vmem:[#allocation4 + $0x20] sm:$0xf] %v1722
        %v1733 = vld [vmem:[#allocation3] sm:$0xff]
        %v1734 = vld [vmem:[#allocation3 + $0x8] sm:$0xff]
        %v1735 = vld [vmem:[#allocation3 + $0x10] sm:$0xff]
        %v1739 = vcombine.low %v1733, %v1733
        %v1740 = vcombine.low %v1734, %v1734
        %v1741 = vcombine.low %v1735, %v1735
        %1742 = vrot.lane.b32.xlu0 %v1739, 22
        %v1743 = vpop.permute.xlu0 %1742
        %1744 = vrot.lane.b32.xlu0 %v1733, 22
        %v1745 = vpop.permute.xlu0 %1744
        %1746 = vrot.lane.b32.xlu0 %v1740, 22
        %v1747 = vpop.permute.xlu0 %1746
        %1748 = vrot.lane.b32.xlu0 %v1734, 22
        %v1749 = vpop.permute.xlu0 %1748
        %1750 = vrot.lane.b32.xlu0 %v1741, 22
        %v1751 = vpop.permute.xlu0 %1750
        %1752 = vrot.lane.b32.xlu0 %v1735, 22
        %v1753 = vpop.permute.xlu0 %1752
        %v1754 = vsel %vm326, %v1743, %v1745
        %v1755 = vsel %vm326, %v1745, %v1747
        %v1756 = vsel %vm326, %v1747, %v1749
        %v1757 = vsel %vm326, %v1749, %v1751
        %v1758 = vsel %vm326, %v1751, %v1753
        %1764 = vst [vmem:[#allocation4] sm:$0xf0] %v1754
        %1765 = vst [vmem:[#allocation4 + $0x8] sm:$0xf0] %v1755
        %1766 = vst [vmem:[#allocation4 + $0x10] sm:$0xf0] %v1756
        %1767 = vst [vmem:[#allocation4 + $0x18] sm:$0xf0] %v1757
        %1768 = vst [vmem:[#allocation4 + $0x20] sm:$0xf0] %v1758
        %v1769 = vld [vmem:[#allocation3] sm:$0xff]
        %v1770 = vld [vmem:[#allocation3 + $0x8] sm:$0xff]
        %v1771 = vld [vmem:[#allocation3 + $0x10] sm:$0xff]
        %v1775 = vcombine.high %v1769, %v1769
        %v1776 = vcombine.high %v1770, %v1770
        %v1777 = vcombine.high %v1771, %v1771
        %1778 = vrot.lane.b32.xlu0 %v1769, 21
        %v1779 = vpop.permute.xlu0 %1778
        %1780 = vrot.lane.b32.xlu0 %v1775, 21
        %v1781 = vpop.permute.xlu0 %1780
        %1782 = vrot.lane.b32.xlu0 %v1770, 21
        %v1783 = vpop.permute.xlu0 %1782
        %1784 = vrot.lane.b32.xlu0 %v1776, 21
        %v1785 = vpop.permute.xlu0 %1784
        %1786 = vrot.lane.b32.xlu0 %v1771, 21
        %v1787 = vpop.permute.xlu0 %1786
        %1788 = vrot.lane.b32.xlu0 %v1777, 21
        %v1789 = vpop.permute.xlu0 %1788
        %v1790 = vsel %vm363, %v1779, %v1781
        %v1791 = vsel %vm363, %v1781, %v1783
        %v1792 = vsel %vm363, %v1783, %v1785
        %v1793 = vsel %vm363, %v1785, %v1787
        %v1794 = vsel %vm363, %v1787, %v1789
        %1800 = vst [vmem:[#allocation4 + $0x28] sm:$0xf] %v1790
        %1801 = vst [vmem:[#allocation4 + $0x30] sm:$0xf] %v1791
        %1802 = vst [vmem:[#allocation4 + $0x38] sm:$0xf] %v1792
        %1803 = vst [vmem:[#allocation4 + $0x40] sm:$0xf] %v1793
        %1804 = vst [vmem:[#allocation4 + $0x48] sm:$0xf] %v1794
        %v1805 = vld [vmem:[#allocation3] sm:$0xff]
        %v1806 = vld [vmem:[#allocation3 + $0x8] sm:$0xff]
        %v1807 = vld [vmem:[#allocation3 + $0x10] sm:$0xff]
        %v1811 = vcombine.low %v1805, %v1805
        %v1812 = vcombine.low %v1806, %v1806
        %v1813 = vcombine.low %v1807, %v1807
        %1814 = vrot.lane.b32.xlu0 %v1811, 1
        %v1815 = vpop.permute.xlu0 %1814
        %1816 = vrot.lane.b32.xlu0 %v1805, 1
        %v1817 = vpop.permute.xlu0 %1816
        %1818 = vrot.lane.b32.xlu0 %v1812, 1
        %v1819 = vpop.permute.xlu0 %1818
        %1820 = vrot.lane.b32.xlu0 %v1806, 1
        %v1821 = vpop.permute.xlu0 %1820
        %1822 = vrot.lane.b32.xlu0 %v1813, 1
        %v1823 = vpop.permute.xlu0 %1822
        %1824 = vrot.lane.b32.xlu0 %v1807, 1
        %v1825 = vpop.permute.xlu0 %1824
        %v1826 = vsel %vm400, %v1815, %v1817
        %v1827 = vsel %vm400, %v1817, %v1819
        %v1828 = vsel %vm400, %v1819, %v1821
        %v1829 = vsel %vm400, %v1821, %v1823
        %v1830 = vsel %vm400, %v1823, %v1825
        %1836 = vst [vmem:[#allocation4 + $0x28] sm:$0xf0] %v1826
        %1837 = vst [vmem:[#allocation4 + $0x30] sm:$0xf0] %v1827
        %1838 = vst [vmem:[#allocation4 + $0x38] sm:$0xf0] %v1828
        %1839 = vst [vmem:[#allocation4 + $0x40] sm:$0xf0] %v1829
        %1840 = vst [vmem:[#allocation4 + $0x48] sm:$0xf0] %v1830
        %v1841 = vld [vmem:[#allocation3 + $0x4] sm:$0xff]
        %v1842 = vld [vmem:[#allocation3 + $0xc] sm:$0xff]
        %v1843 = vld [vmem:[#allocation3 + $0x14] sm:$0xf]
        %v1846 = vcombine.high %v1841, %v1841
        %v1847 = vcombine.high %v1842, %v1842
        %1850 = vst [vmem:[#allocation4 + $0x50] sm:$0xf] %v1841
        %1851 = vst [vmem:[#allocation4 + $0x58] sm:$0xf] %v1846
        %1852 = vst [vmem:[#allocation4 + $0x60] sm:$0xf] %v1842
        %1853 = vst [vmem:[#allocation4 + $0x68] sm:$0xf] %v1847
        %1854 = vst [vmem:[#allocation4 + $0x70] sm:$0xf] %v1843
        %v1855 = vld [vmem:[#allocation3 + $0x4] sm:$0xff]
        %v1856 = vld [vmem:[#allocation3 + $0xc] sm:$0xff]
        %v1857 = vld [vmem:[#allocation3 + $0x14] sm:$0xff]
        %v1861 = vcombine.low %v1855, %v1855
        %v1862 = vcombine.low %v1856, %v1856
        %v1863 = vcombine.low %v1857, %v1857
        %1864 = vrot.lane.b32.xlu0 %v1861, 127
        %v1865 = vpop.permute.xlu0 %1864
        %1866 = vrot.lane.b32.xlu0 %v1855, 127
        %v1867 = vpop.permute.xlu0 %1866
        %1868 = vrot.lane.b32.xlu0 %v1862, 127
        %v1869 = vpop.permute.xlu0 %1868
        %1870 = vrot.lane.b32.xlu0 %v1856, 127
        %v1871 = vpop.permute.xlu0 %1870
        %1872 = vrot.lane.b32.xlu0 %v1863, 127
        %v1873 = vpop.permute.xlu0 %1872
        %1874 = vrot.lane.b32.xlu0 %v1857, 127
        %v1875 = vpop.permute.xlu0 %1874
        %v1876 = vsel %vm451, %v1865, %v1867
        %v1877 = vsel %vm451, %v1867, %v1869
        %v1878 = vsel %vm451, %v1869, %v1871
        %v1879 = vsel %vm451, %v1871, %v1873
        %v1880 = vsel %vm451, %v1873, %v1875
        %1886 = vst [vmem:[#allocation4 + $0x50] sm:$0xf0] %v1876
        %1887 = vst [vmem:[#allocation4 + $0x58] sm:$0xf0] %v1877
        %1888 = vst [vmem:[#allocation4 + $0x60] sm:$0xf0] %v1878
        %1889 = vst [vmem:[#allocation4 + $0x68] sm:$0xf0] %v1879
        %1890 = vst [vmem:[#allocation4 + $0x70] sm:$0xf0] %v1880
        %v1891 = vld [vmem:[#allocation3 + $0x4] sm:$0xff]
        %v1892 = vld [vmem:[#allocation3 + $0xc] sm:$0xff]
        %v1893 = vld [vmem:[#allocation3 + $0x14] sm:$0xff]
        %v1897 = vcombine.high %v1891, %v1891
        %v1898 = vcombine.high %v1892, %v1892
        %v1899 = vcombine.high %v1893, %v1893
        %1900 = vrot.lane.b32.xlu0 %v1891, 107
        %v1901 = vpop.permute.xlu0 %1900
        %1902 = vrot.lane.b32.xlu0 %v1897, 107
        %v1903 = vpop.permute.xlu0 %1902
        %1904 = vrot.lane.b32.xlu0 %v1892, 107
        %v1905 = vpop.permute.xlu0 %1904
        %1906 = vrot.lane.b32.xlu0 %v1898, 107
        %v1907 = vpop.permute.xlu0 %1906
        %1908 = vrot.lane.b32.xlu0 %v1893, 107
        %v1909 = vpop.permute.xlu0 %1908
        %1910 = vrot.lane.b32.xlu0 %v1899, 107
        %v1911 = vpop.permute.xlu0 %1910
        %v1912 = vsel %vm488, %v1901, %v1903
        %v1913 = vsel %vm488, %v1903, %v1905
        %v1914 = vsel %vm488, %v1905, %v1907
        %v1915 = vsel %vm488, %v1907, %v1909
        %v1916 = vsel %vm488, %v1909, %v1911
        %1922 = vst [vmem:[#allocation4 + $0x78] sm:$0xf] %v1912
        %1923 = vst [vmem:[#allocation4 + $0x80] sm:$0xf] %v1913
        %1924 = vst [vmem:[#allocation4 + $0x88] sm:$0xf] %v1914
        %1925 = vst [vmem:[#allocation4 + $0x90] sm:$0xf] %v1915
        %1926 = vst [vmem:[#allocation4 + $0x98] sm:$0xf] %v1916
        %v1927 = vld [vmem:[#allocation3 + $0x4] sm:$0xff]
        %v1928 = vld [vmem:[#allocation3 + $0xc] sm:$0xff]
        %v1929 = vld [vmem:[#allocation3 + $0x14] sm:$0xff]
        %v1933 = vcombine.low %v1927, %v1927
        %v1934 = vcombine.low %v1928, %v1928
        %v1935 = vcombine.low %v1929, %v1929
        %1936 = vrot.lane.b32.xlu0 %v1933, 106
        %v1937 = vpop.permute.xlu0 %1936
        %1938 = vrot.lane.b32.xlu0 %v1927, 106
        %v1939 = vpop.permute.xlu0 %1938
        %1940 = vrot.lane.b32.xlu0 %v1934, 106
        %v1941 = vpop.permute.xlu0 %1940
        %1942 = vrot.lane.b32.xlu0 %v1928, 106
        %v1943 = vpop.permute.xlu0 %1942
        %1944 = vrot.lane.b32.xlu0 %v1935, 106
        %v1945 = vpop.permute.xlu0 %1944
        %1946 = vrot.lane.b32.xlu0 %v1929, 106
        %v1947 = vpop.permute.xlu0 %1946
        %v1948 = vsel %vm525, %v1937, %v1939
        %v1949 = vsel %vm525, %v1939, %v1941
        %v1950 = vsel %vm525, %v1941, %v1943
        %v1951 = vsel %vm525, %v1943, %v1945
        %v1952 = vsel %vm525, %v1945, %v1947
        %1958 = vst [vmem:[#allocation4 + $0x78] sm:$0xf0] %v1948
        %1959 = vst [vmem:[#allocation4 + $0x80] sm:$0xf0] %v1949
        %1960 = vst [vmem:[#allocation4 + $0x88] sm:$0xf0] %v1950
        %1961 = vst [vmem:[#allocation4 + $0x90] sm:$0xf0] %v1951
        %1962 = vst [vmem:[#allocation4 + $0x98] sm:$0xf0] %v1952
        %v1963 = vld [vmem:[#allocation3 + $0x4] sm:$0xff]
        %v1964 = vld [vmem:[#allocation3 + $0xc] sm:$0xff]
        %v1965 = vld [vmem:[#allocation3 + $0x14] sm:$0xff]
        %v1969 = vcombine.high %v1963, %v1963
        %v1970 = vcombine.high %v1964, %v1964
        %v1971 = vcombine.high %v1965, %v1965
        %1972 = vrot.lane.b32.xlu0 %v1963, 105
        %v1973 = vpop.permute.xlu0 %1972
        %1974 = vrot.lane.b32.xlu0 %v1969, 105
        %v1975 = vpop.permute.xlu0 %1974
        %1976 = vrot.lane.b32.xlu0 %v1964, 105
        %v1977 = vpop.permute.xlu0 %1976
        %1978 = vrot.lane.b32.xlu0 %v1970, 105
        %v1979 = vpop.permute.xlu0 %1978
        %1980 = vrot.lane.b32.xlu0 %v1965, 105
        %v1981 = vpop.permute.xlu0 %1980
        %1982 = vrot.lane.b32.xlu0 %v1971, 105
        %v1983 = vpop.permute.xlu0 %1982
        %v1984 = vsel %vm562, %v1973, %v1975
        %v1985 = vsel %vm562, %v1975, %v1977
        %v1986 = vsel %vm562, %v1977, %v1979
        %v1987 = vsel %vm562, %v1979, %v1981
        %v1988 = vsel %vm562, %v1981, %v1983
        %1994 = vst [vmem:[#allocation4 + $0xa0] sm:$0xf] %v1984
        %1995 = vst [vmem:[#allocation4 + $0xa8] sm:$0xf] %v1985
        %1996 = vst [vmem:[#allocation4 + $0xb0] sm:$0xf] %v1986
        %1997 = vst [vmem:[#allocation4 + $0xb8] sm:$0xf] %v1987
        %1998 = vst [vmem:[#allocation4 + $0xc0] sm:$0xf] %v1988
        %v1999 = vld [vmem:[%s4] sm:$0xf]
        %v2000 = vld [vmem:[#allocation4] sm:$0xff]
        %v2001 = vld [vmem:[#allocation4 + $0x8] sm:$0xff]
        %v2002 = vld [vmem:[#allocation4 + $0x10] sm:$0xff]
        %v2003 = vld [vmem:[#allocation4 + $0x18] sm:$0xff]
        %v2004 = vld [vmem:[#allocation4 + $0x20] sm:$0xff]
        %v2005 = vld [vmem:[#allocation4 + $0x28] sm:$0xff]
        %v2006 = vld [vmem:[#allocation4 + $0x30] sm:$0xff]
        %v2007 = vld [vmem:[#allocation4 + $0x38] sm:$0xff]
        %v2008 = vld [vmem:[#allocation4 + $0x40] sm:$0xff]
        %v2009 = vld [vmem:[#allocation4 + $0x48] sm:$0xff]
        %v2010 = vld [vmem:[#allocation4 + $0x50] sm:$0xff]
        %v2011 = vld [vmem:[#allocation4 + $0x58] sm:$0xff]
        %v2012 = vld [vmem:[#allocation4 + $0x60] sm:$0xff]
        %v2013 = vld [vmem:[#allocation4 + $0x68] sm:$0xff]
        %v2014 = vld [vmem:[#allocation4 + $0x70] sm:$0xff]
        %v2015 = vld [vmem:[#allocation4 + $0x78] sm:$0xff]
        %v2016 = vld [vmem:[#allocation4 + $0x80] sm:$0xff]
        %v2017 = vld [vmem:[#allocation4 + $0x88] sm:$0xff]
        %v2018 = vld [vmem:[#allocation4 + $0x90] sm:$0xff]
        %v2019 = vld [vmem:[#allocation4 + $0x98] sm:$0xff]
        %v2020 = vld [vmem:[#allocation4 + $0xa0] sm:$0xf]
        %v2021 = vld [vmem:[#allocation4 + $0xa8] sm:$0xf]
        %v2022 = vld [vmem:[#allocation4 + $0xb0] sm:$0xf]
        %v2023 = vld [vmem:[#allocation4 + $0xb8] sm:$0xf]
        %v2024 = vld [vmem:[#allocation4 + $0xc0] sm:$0xf]
        %v2025 = vld [vmem:[%s5] sm:$0xf]
        %2027 = vset.pattern.permute.xlu0 0
        %2028 = vperm.xlu0 %2027, %v2025
        %v2029 = vpop.permute.xlu0 %2028
        %vm2031 = vcmask 293888
        %v2033 = vsel %vm2031, %v1999, 0
        %v2036 = vsel %vm1292, %v2020, 0
        %v2039 = vsel %vm1292, %v2021, 0
        %v2042 = vsel %vm1292, %v2022, 0
        %v2045 = vsel %vm1292, %v2023, 0
        %v2048 = vsel %vm1292, %v2024, 0
        %2050 = vmatprep.subr.mxu0 %v2001
        %2051 = vmatpush1.msra.mxu0 %v2000
        %2052 = vmatprep.subr.mxu0 %v2006
        %2053 = vmatpush1.msra.mxu0 %v2005
        %2054 = vmatprep.subr.mxu0 %v2011
        %2055 = vmatpush1.msra.mxu0 %v2010
        %2056 = vmatprep.subr.mxu0 %v2016
        %2057 = vmatpush1.msra.mxu0 %v2015
        %2058 = vmatprep.subr.mxu0 %v2039
        %2059 = vmatpush1.msra.mxu0 %v2036
        %2060 = vmatprep.subr.mxu0 0.0
        %2061 = vmatpush1.msra.mxu0 0.0
        %2062 = vmatprep.subr.mxu0 0.0
        %2063 = vmatpush1.msra.mxu0 0.0
        %2064 = vmatprep.subr.mxu0 0.0
        %2065 = vmatpush1.msra.mxu0 0.0
        %2066 = vmatprep.subr.mxu0 0.0
        %2067 = vmatpush1.msra.mxu0 0.0
        %2068 = vmatprep.subr.mxu0 0.0
        %2069 = vmatpush1.msra.mxu0 0.0
        %2070 = vmatprep.subr.mxu0 0.0
        %2071 = vmatpush1.msra.mxu0 0.0
        %2072 = vmatprep.subr.mxu0 0.0
        %2073 = vmatpush1.msra.mxu0 0.0
        %2074 = vmatprep.subr.mxu0 0.0
        %2075 = vmatpush1.msra.mxu0 0.0
        %2076 = vmatprep.subr.mxu0 0.0
        %2077 = vmatpush1.msra.mxu0 0.0
        %2078 = vmatprep.subr.mxu0 0.0
        %2079 = vmatpush1.msra.mxu0 0.0
        %2080 = vmatprep.subr.mxu0 0.0
        %2081 = vmatpush1.msra.mxu0 0.0
        %2082 = vmatprep.subr.mxu0 0.0
        %2083 = vmatpush1.msra.mxu0 0.0
        %2084 = vmatprep.subr.mxu0 0.0
        %2085 = vmatpush1.msra.mxu0 0.0
        %2086 = vmatprep.subr.mxu0 0.0
        %2087 = vmatpush1.msra.mxu0 0.0
        %2088 = vmatprep.subr.mxu0 0.0
        %2089 = vmatpush1.msra.mxu0 0.0
        %2090 = vmatprep.subr.mxu0 0.0
        %2091 = vmatpush1.msra.mxu0 0.0
        %2092 = vmatprep.subr.mxu0 0.0
        %2093 = vmatpush1.msra.mxu0 0.0
        %2094 = vmatprep.subr.mxu0 0.0
        %2095 = vmatpush1.msra.mxu0 0.0
        %2096 = vmatprep.subr.mxu0 0.0
        %2097 = vmatpush1.msra.mxu0 0.0
        %2098 = vmatprep.subr.mxu0 0.0
        %2099 = vmatpush1.msra.mxu0 0.0
        %2100 = vmatprep.subr.mxu0 0.0
        %2101 = vmatpush1.msra.mxu0 0.0
        %2102 = vmatprep.subr.mxu0 0.0
        %2103 = vmatpush1.msra.mxu0 0.0
        %2104 = vmatprep.subr.mxu0 0.0
        %2105 = vmatpush1.msra.mxu0 0.0
        %2106 = vmatprep.subr.mxu0 0.0
        %2107 = vmatpush1.msra.mxu0 0.0
        %2108 = vmatprep.subr.mxu0 0.0
        %2109 = vmatpush1.msra.mxu0 0.0
        %2110 = vmatprep.subr.mxu0 0.0
        %2111 = vmatpush1.msra.mxu0 0.0
        %2112 = vmatprep.subr.mxu0 0.0
        %2113 = vmatpush1.msra.mxu0 0.0
        %2114 = vmatprep.mubr.f32.mxu0 0.0
        %2115 = vmatmul.mubr.f32.gmra.mrb[0].mxu0 %v2033
        %v2116 = vpop.f32.mrb[0].mxu0
        %v2117 = vadd.f32 %v2029, %v2116
        %v2118 = vpop.f32.mrb[0].mxu0
        %v2119 = vadd.f32 %v2029, %v2118
        %2120 = vdwg.mxu0
        %2121 = vmatprep.subr.mxu0 %v2003
        %2122 = vmatpush1.msra.mxu0 %v2002
        %2123 = vmatprep.subr.mxu0 %v2008
        %2124 = vmatpush1.msra.mxu0 %v2007
        %2125 = vmatprep.subr.mxu0 %v2013
        %2126 = vmatpush1.msra.mxu0 %v2012
        %2127 = vmatprep.subr.mxu0 %v2018
        %2128 = vmatpush1.msra.mxu0 %v2017
        %2129 = vmatprep.subr.mxu0 %v2045
        %2130 = vmatpush1.msra.mxu0 %v2042
        %2131 = vmatprep.subr.mxu0 0.0
        %2132 = vmatpush1.msra.mxu0 0.0
        %2133 = vmatprep.subr.mxu0 0.0
        %2134 = vmatpush1.msra.mxu0 0.0
        %2135 = vmatprep.subr.mxu0 0.0
        %2136 = vmatpush1.msra.mxu0 0.0
        %2137 = vmatprep.subr.mxu0 0.0
        %2138 = vmatpush1.msra.mxu0 0.0
        %2139 = vmatprep.subr.mxu0 0.0
        %2140 = vmatpush1.msra.mxu0 0.0
        %2141 = vmatprep.subr.mxu0 0.0
        %2142 = vmatpush1.msra.mxu0 0.0
        %2143 = vmatprep.subr.mxu0 0.0
        %2144 = vmatpush1.msra.mxu0 0.0
        %2145 = vmatprep.subr.mxu0 0.0
        %2146 = vmatpush1.msra.mxu0 0.0
        %2147 = vmatprep.subr.mxu0 0.0
        %2148 = vmatpush1.msra.mxu0 0.0
        %2149 = vmatprep.subr.mxu0 0.0
        %2150 = vmatpush1.msra.mxu0 0.0
        %2151 = vmatprep.subr.mxu0 0.0
        %2152 = vmatpush1.msra.mxu0 0.0
        %2153 = vmatprep.subr.mxu0 0.0
        %2154 = vmatpush1.msra.mxu0 0.0
        %2155 = vmatprep.subr.mxu0 0.0
        %2156 = vmatpush1.msra.mxu0 0.0
        %2157 = vmatprep.subr.mxu0 0.0
        %2158 = vmatpush1.msra.mxu0 0.0
        %2159 = vmatprep.subr.mxu0 0.0
        %2160 = vmatpush1.msra.mxu0 0.0
        %2161 = vmatprep.subr.mxu0 0.0
        %2162 = vmatpush1.msra.mxu0 0.0
        %2163 = vmatprep.subr.mxu0 0.0
        %2164 = vmatpush1.msra.mxu0 0.0
        %2165 = vmatprep.subr.mxu0 0.0
        %2166 = vmatpush1.msra.mxu0 0.0
        %2167 = vmatprep.subr.mxu0 0.0
        %2168 = vmatpush1.msra.mxu0 0.0
        %2169 = vmatprep.subr.mxu0 0.0
        %2170 = vmatpush1.msra.mxu0 0.0
        %2171 = vmatprep.subr.mxu0 0.0
        %2172 = vmatpush1.msra.mxu0 0.0
        %2173 = vmatprep.subr.mxu0 0.0
        %2174 = vmatpush1.msra.mxu0 0.0
        %2175 = vmatprep.subr.mxu0 0.0
        %2176 = vmatpush1.msra.mxu0 0.0
        %2177 = vmatprep.subr.mxu0 0.0
        %2178 = vmatpush1.msra.mxu0 0.0
        %2179 = vmatprep.subr.mxu0 0.0
        %2180 = vmatpush1.msra.mxu0 0.0
        %2181 = vmatprep.subr.mxu0 0.0
        %2182 = vmatpush1.msra.mxu0 0.0
        %2183 = vmatprep.subr.mxu0 0.0
        %2184 = vmatpush1.msra.mxu0 0.0
        %2185 = vmatprep.mubr.f32.mxu0 0.0
        %2186 = vmatmul.mubr.f32.gmra.mrb[0].mxu0 %v2033
        %v2187 = vpop.f32.mrb[0].mxu0
        %v2188 = vadd.f32 %v2029, %v2187
        %v2189 = vpop.f32.mrb[0].mxu0
        %v2190 = vadd.f32 %v2029, %v2189
        %2191 = vdwg.mxu0
        %2192 = vmatprep.subr.mxu0 0.0
        %2193 = vmatpush1.msra.mxu0 %v2004
        %2194 = vmatprep.subr.mxu0 0.0
        %2195 = vmatpush1.msra.mxu0 %v2009
        %2196 = vmatprep.subr.mxu0 0.0
        %2197 = vmatpush1.msra.mxu0 %v2014
        %2198 = vmatprep.subr.mxu0 0.0
        %2199 = vmatpush1.msra.mxu0 %v2019
        %2200 = vmatprep.subr.mxu0 0.0
        %2201 = vmatpush1.msra.mxu0 %v2048
        %2202 = vmatprep.subr.mxu0 0.0
        %2203 = vmatpush1.msra.mxu0 0.0
        %2204 = vmatprep.subr.mxu0 0.0
        %2205 = vmatpush1.msra.mxu0 0.0
        %2206 = vmatprep.subr.mxu0 0.0
        %2207 = vmatpush1.msra.mxu0 0.0
        %2208 = vmatprep.subr.mxu0 0.0
        %2209 = vmatpush1.msra.mxu0 0.0
        %2210 = vmatprep.subr.mxu0 0.0
        %2211 = vmatpush1.msra.mxu0 0.0
        %2212 = vmatprep.subr.mxu0 0.0
        %2213 = vmatpush1.msra.mxu0 0.0
        %2214 = vmatprep.subr.mxu0 0.0
        %2215 = vmatpush1.msra.mxu0 0.0
        %2216 = vmatprep.subr.mxu0 0.0
        %2217 = vmatpush1.msra.mxu0 0.0
        %2218 = vmatprep.subr.mxu0 0.0
        %2219 = vmatpush1.msra.mxu0 0.0
        %2220 = vmatprep.subr.mxu0 0.0
        %2221 = vmatpush1.msra.mxu0 0.0
        %2222 = vmatprep.subr.mxu0 0.0
        %2223 = vmatpush1.msra.mxu0 0.0
        %2224 = vmatprep.subr.mxu0 0.0
        %2225 = vmatpush1.msra.mxu0 0.0
        %2226 = vmatprep.subr.mxu0 0.0
        %2227 = vmatpush1.msra.mxu0 0.0
        %2228 = vmatprep.subr.mxu0 0.0
        %2229 = vmatpush1.msra.mxu0 0.0
        %2230 = vmatprep.subr.mxu0 0.0
        %2231 = vmatpush1.msra.mxu0 0.0
        %2232 = vmatprep.subr.mxu0 0.0
        %2233 = vmatpush1.msra.mxu0 0.0
        %2234 = vmatprep.subr.mxu0 0.0
        %2235 = vmatpush1.msra.mxu0 0.0
        %2236 = vmatprep.subr.mxu0 0.0
        %2237 = vmatpush1.msra.mxu0 0.0
        %2238 = vmatprep.subr.mxu0 0.0
        %2239 = vmatpush1.msra.mxu0 0.0
        %2240 = vmatprep.subr.mxu0 0.0
        %2241 = vmatpush1.msra.mxu0 0.0
        %2242 = vmatprep.subr.mxu0 0.0
        %2243 = vmatpush1.msra.mxu0 0.0
        %2244 = vmatprep.subr.mxu0 0.0
        %2245 = vmatpush1.msra.mxu0 0.0
        %2246 = vmatprep.subr.mxu0 0.0
        %2247 = vmatpush1.msra.mxu0 0.0
        %2248 = vmatprep.subr.mxu0 0.0
        %2249 = vmatpush1.msra.mxu0 0.0
        %2250 = vmatprep.subr.mxu0 0.0
        %2251 = vmatpush1.msra.mxu0 0.0
        %2252 = vmatprep.subr.mxu0 0.0
        %2253 = vmatpush1.msra.mxu0 0.0
        %2254 = vmatprep.subr.mxu0 0.0
        %2255 = vmatpush1.msra.mxu0 0.0
        %2256 = vmatprep.mubr.f32.mxu0 0.0
        %2257 = vmatmul.mubr.f32.gmra.mrb[0].mxu0 %v2033
        %v2258 = vpop.f32.mrb[0].mxu0
        %v2259 = vadd.f32 %v2029, %v2258
        %v2260 = vpop.f32.mrb[0].mxu0
        %2261 = vdwg.mxu0
        %v2262 = vmul.f32 %v2117, %v2117
        %v2263 = vmul.f32 %v2119, %v2119
        %v2264 = vmul.f32 %v2188, %v2188
        %v2265 = vmul.f32 %v2190, %v2190
        %v2266 = vmul.f32 %v2259, %v2259
        %v2267 = vmul.f32 %v2117, %v2262
        %v2268 = vmul.f32 %v2119, %v2263
        %v2269 = vmul.f32 %v2188, %v2264
        %v2270 = vmul.f32 %v2190, %v2265
        %v2271 = vmul.f32 %v2259, %v2266
        %v2272 = vmul.f32 %v2267, 0.044715
        %v2273 = vmul.f32 %v2268, 0.044715
        %v2274 = vmul.f32 %v2269, 0.044715
        %v2275 = vmul.f32 %v2270, 0.044715
        %v2276 = vmul.f32 %v2271, 0.044715
        %v2277 = vadd.f32 %v2117, %v2272
        %v2278 = vadd.f32 %v2119, %v2273
        %v2279 = vadd.f32 %v2188, %v2274
        %v2280 = vadd.f32 %v2190, %v2275
        %v2281 = vadd.f32 %v2259, %v2276
        %v2282 = vmul.f32 %v2277, 0.7978846
        %v2283 = vmul.f32 %v2278, 0.7978846
        %v2284 = vmul.f32 %v2279, 0.7978846
        %v2285 = vmul.f32 %v2280, 0.7978846
        %v2286 = vmul.f32 %v2281, 0.7978846
        %v2287 = vtanh.pop %v2282
        %v2288 = vtanh.pop %v2283
        %v2289 = vtanh.pop %v2284
        %v2290 = vtanh.pop %v2285
        %v2291 = vtanh.pop %v2286
        %v2292 = vadd.f32 %v2287, 1.0
        %v2293 = vadd.f32 %v2288, 1.0
        %v2294 = vadd.f32 %v2289, 1.0
        %v2295 = vadd.f32 %v2290, 1.0
        %v2296 = vadd.f32 %v2291, 1.0
        %v2297 = vmul.f32 %v2292, 0.5
        %v2298 = vmul.f32 %v2293, 0.5
        %v2299 = vmul.f32 %v2294, 0.5
        %v2300 = vmul.f32 %v2295, 0.5
        %v2301 = vmul.f32 %v2296, 0.5
        %v2302 = vmul.f32 %v2117, %v2297
        %v2303 = vmul.f32 %v2119, %v2298
        %v2304 = vmul.f32 %v2188, %v2299
        %v2305 = vmul.f32 %v2190, %v2300
        %v2306 = vmul.f32 %v2259, %v2301
        %v2311 = vcombine.low %v2302, %v2303
        %v2312 = vcombine.low %v2304, %v2305
        %2315 = vst [vmem:[%s267] sm:$0xff] %v2311
        %2316 = vst [vmem:[%s267 + $0x8] sm:$0xff] %v2312
        %2317 = vst [vmem:[%s267 + $0x10] sm:$0xf] %v2306
        %s2318 = sand.u32 %s162, 1
        %s2319 = scalar_lea.sflag [#allocation7], %s2318
        %s2320 = sand.u32 %s162, 1
        %s2321 = smul.addr %s2320, 20
        %s2322 = scalar_lea.vmem [#allocation8], %s2321
        // Predicated region
        $region49: #{tpu_custom_call.1} parent=43 // pred_check
          %p2323 = pneg %p172
        $region50: #{tpu_custom_call.1} parent=43 // pred_check_branch
          %2325 = sbr.rel (%p2323) target = $region52
        $region51: #{tpu_custom_call.1} parent=43 // pred_region
          %s2327 = ssub.s32 320, 320
          %2328 = vsyncadd %s2319, %s2327
          %s2329 = smul.addr %s23, 5
          %s2330 = smul.addr %s2329, 64
          %s2331 = scalar_lea.hbm %s6, %s2330
          %s2333 = sshll.u32 %s2322, 4
          %s2334 = int_to_ptr.vmem [resolvable:$true] %s2333
          %2336 = dma.vmem_to_hbm [thread:$0]  %s2334, 320, %s2331, %s2319
        $region52: #{tpu_custom_call.1} parent=43 // pred_fallthru
          _
      $region44: #{tpu_custom_call.1} parent=5 // pred_fallthru
        _
      %p2337 = scmp.le.s32.totalorder 2, %s18
      // Predicated region
      $region53: #{tpu_custom_call.1} parent=5 // pred_check
        %p2338 = pneg %p2337
      $region54: #{tpu_custom_call.1} parent=5 // pred_check_branch
        %2340 = sbr.rel (%p2338) target = $region56
      $region55: #{tpu_custom_call.1} parent=5 // pred_region
        %s2341 = ssub.s32 %s18, 2
        // Predicated region
        $region57: #{tpu_custom_call.1} parent=55 // pred_check
          %p2342 = pneg %p178
        $region58: #{tpu_custom_call.1} parent=55 // pred_check_branch
          %2344 = sbr.rel (%p2342) target = $region60
        $region59: #{tpu_custom_call.1} parent=55 // pred_region
          %s2345 = sand.u32 %s163, 1
          %s2346 = scalar_lea.sflag [#allocation7], %s2345
          %s2347 = sand.u32 %s163, 1
          %s2348 = smul.addr %s2347, 20
          %s2349 = scalar_lea.vmem [#allocation8], %s2348
          %2350 = dma.done %s2346, 320
        $region60: #{tpu_custom_call.1} parent=55 // pred_fallthru
          _
      $region56: #{tpu_custom_call.1} parent=5 // pred_fallthru
        _
    $region6: #{tpu_custom_call.1} parent=1 // loop_footer
      %s22 = sadd.s32 1, %s18
    $region7: #{tpu_custom_call.1} parent=1 // loop_footer_branch
      %17 = sbr.rel target = $region3
    $region8: #{tpu_custom_call.1} parent=1 // loop_exit
      _
    %2351 = vsyncpa [#allocation6], 1
    %s2352 = scalar_lea.sflag [#allocation6], 1
    %2353 = vsyncpa %s2352, 1
    %2354 = vsyncpa [#allocation7], 1
    %s2355 = scalar_lea.sflag [#allocation7], 1
    %2356 = vsyncpa %s2355, 1

</llo_original>
